<compile_context>
chip_gen: v7x
topology: tpu7x:2x2x1
jax: 0.10.0
libtpu: 0.0.40
codegen_flags: <defaults>
</compile_context>

<pallas_src>
import functools

import jax
import jax.numpy as jnp
from jax.experimental import pallas as pl
from jax.experimental.pallas import tpu as pltpu


def _round_up(x, m):
    return (x + m - 1) // m * m


def _cdiv(a, b):
    return -(-a // b)


def _vmem_capacity_bytes():
    try:
        cap = getattr(pltpu.get_tpu_info(), "vmem_capacity_bytes", None)
        if cap:
            return int(cap)
    except Exception:
        pass
    return 64 * 2 ** 20  # conservative default (v7x per-TC VMEM)


def _modconv_kernel(s_ref, d_ref, bd_ref, w_ref, x_hbm, o_ref,
                    wcache, xwin, sem, *, tap_offs, tp, tw, cdt):
    # s_ref : (1, 1, C_in)      per-input-channel modulation (f32)
    # d_ref : (1, C_out, 1)     per-(batch, out-channel) demod scale (f32)
    # bd_ref: (1, C_out, 1)     bias * demod (f32)  (module adds bias pre-demod)
    # w_ref : (T, C_out, C_in)  conv weight, tap-major, VMEM resident (cdt)
    # x_hbm : (B, C_in, S_pad)  zero-padded, flattened input left in HBM (cdt)
    # o_ref : (1, C_out, tp)    output tile (lane-dense, tp % 128 == 0)
    # wcache: (T, C_out, C_in)  per-batch modulated weight cache (cdt, scratch)
    # xwin  : (2, C_in, tw)     double-buffered input window (scratch)
    # sem   : (2,)              DMA semaphores
    b = pl.program_id(0)
    q = pl.program_id(1)
    n_q = pl.num_programs(1)
    slot = q % 2

    def start_fetch(qi, sl):
        pltpu.make_async_copy(x_hbm.at[b, :, pl.ds(qi * tp, tw)],
                              xwin.at[sl], sem.at[sl]).start()

    @pl.when(q == 0)
    def _():
        # First tile of this batch: fetch its window and, overlapping the DMA,
        # rebuild the per-batch modulated+demodulated weight cache.
        start_fetch(0, 0)
        wcache[...] = (w_ref[...] * s_ref[0] * d_ref[0]).astype(cdt)

    # Prefetch the next tile's window into the other slot (overlaps compute).
    @pl.when(q + 1 < n_q)
    def _():
        start_fetch(q + 1, 1 - slot)

    # Wait for this tile's window (issued above if q == 0, else at step q-1).
    pltpu.make_async_copy(x_hbm.at[b, :, pl.ds(0, tw)],
                          xwin.at[slot], sem.at[slot]).wait()

    # Shifted-matmul tap loop: one (C_out, C_in) x (C_in, tp) MXU matmul per
    # conv tap, f32 accumulation.
    # TODO(synk): for small C_out the MXU M dim is underfilled; fusing several
    # batches' cached weights into one LHS tile would recover utilization.
    xw = xwin[slot]                                          # (C_in, tw)
    c_out = o_ref.shape[1]
    acc = jnp.zeros((c_out, tp), jnp.float32)
    for t, off in enumerate(tap_offs):
        x_t = xw[:, off:off + tp]                            # (C_in, tp)
        acc = acc + jnp.dot(wcache[t], x_t,
                            preferred_element_type=jnp.float32)
    o_ref[0] = (acc + bd_ref[0]).astype(o_ref.dtype)


def modulated_conv2d(x, s, weight, bias, *, stride=1, padding=0, dilation=1,
                     eps=1e-6, demod=True, compute_dtype=None, tp=None):
    """ModulatedConv2d forward.  x: (B,C_in,H,W); s: (B,C_in);
    weight: (C_out,C_in,kH,kW); bias: (C_out,).  stride must be 1, groups 1."""
    B, C_in, H, W = x.shape
    C_out, C_in_w, kH, kW = weight.shape
    assert C_in_w == C_in, "groups != 1 not supported"
    # TODO(synk): stride > 1 would need a per-phase decimated input (or an
    # im2col fallback); only stride == 1 is implemented in the Pallas path.
    assert stride == 1, "only stride == 1 is supported"

    if compute_dtype is None:
        compute_dtype = jnp.bfloat16 if x.dtype == jnp.float32 else x.dtype
    compute_dtype = jnp.dtype(compute_dtype)
    out_dtype = x.dtype
    f32 = jnp.float32

    Hp, Wp = H + 2 * padding, W + 2 * padding
    Ho = Hp - dilation * (kH - 1)
    Wo = Wp - dilation * (kW - 1)
    assert Ho > 0 and Wo > 0
    T = kH * kW
    # Flattened padded-width output grid: q = ho*Wp + w; columns w >= Wo are
    # computed but discarded (wasted fraction (Wp-Wo)/Wp, small).
    Q = Ho * Wp
    max_off = dilation * ((kH - 1) * Wp + (kW - 1))
    tap_offs = tuple(dilation * (kh * Wp + kw)
                     for kh in range(kH) for kw in range(kW))

    # ---- demod scale hoisted out of the kernel (B x C_out is tiny) ----------
    s32 = s.astype(f32)
    w32 = weight.astype(f32)
    if demod:
        w_sq = jnp.sum(w32 * w32, axis=(2, 3))               # (C_out, C_in)
        sigma = (s32 * s32) @ w_sq.T                         # (B, C_out)
        d = 1.0 / jnp.sqrt(sigma + eps)
    else:
        d = jnp.ones((B, C_out), f32)
    bd = bias.astype(f32)[None, :] * d                       # bias scaled too

    # ---- generation-aware tiling --------------------------------------------
    C_in_p = _round_up(C_in, 8)                              # sublane-align channels
    cd_b = compute_dtype.itemsize
    od_b = jnp.dtype(out_dtype).itemsize
    cap = _vmem_capacity_bytes()
    budget = int(cap * 0.70)                                 # ~90 MiB v5e/v6e, ~45 MiB v7x
    headroom = 8 * 2 ** 20                                   # Mosaic scratch / relayouts
    fixed = T * C_out * C_in_p * cd_b * 3                    # weight in (2 bufs) + cache
    fixed += 2 * C_in_p * cd_b * (max_off + 128)             # halo part of window bufs
    fixed += 12 * C_out * 4 + 4 * C_in_p * 4                 # s/d/bd blocks (tiny)
    per_col = (5 * C_in_p * cd_b                             # window x2 + loaded val + taps
               + 2 * C_out * od_b + 2 * C_out * 4)           # out x2 + f32 acc/temp
    if tp is None:
        avail = budget - fixed - headroom
        tp = (max(128, min(2048, (avail // per_col) // 128 * 128))
              if avail > per_col * 128 else 128)
    else:
        tp = _round_up(int(tp), 128)
    # Balance tiles over Q to avoid a mostly-dead last tile.
    tp = min(tp, _round_up(Q, 128))
    n_q = _cdiv(_round_up(Q, 128), tp)
    tp = _round_up(_cdiv(Q, n_q), 128)
    n_q = _cdiv(Q, tp)
    tw = _round_up(tp + max_off, 128)
    Q_out = n_q * tp
    need = fixed + per_col * tp + headroom
    vmem_limit = int(min(int(cap * 0.92), max(32 * 2 ** 20, 2 * need)))

    # ---- operands (input is read exactly once by the kernel) ----------------
    S = Hp * Wp
    S_pad = _round_up(max(S, (n_q - 1) * tp + tw), 128)
    xp = jnp.pad(x, ((0, 0), (0, C_in_p - C_in),
                     (padding, padding), (padding, padding)))
    xp_flat = jnp.pad(xp.reshape(B, C_in_p, S),
                      ((0, 0), (0, 0), (0, S_pad - S))).astype(compute_dtype)

    w_taps = jnp.pad(w32, ((0, 0), (0, C_in_p - C_in), (0, 0), (0, 0)))
    w_taps = jnp.transpose(w_taps, (2, 3, 0, 1)).reshape(T, C_out, C_in_p)
    w_taps = w_taps.astype(compute_dtype)                    # halves residency on bf16
    s_in = jnp.pad(s32, ((0, 0), (0, C_in_p - C_in)))[:, None, :]   # (B, 1, C_in_p)
    d_in = d[:, :, None]                                             # (B, C_out, 1)
    bd_in = bd[:, :, None]                                           # (B, C_out, 1)

    kernel = functools.partial(_modconv_kernel, tap_offs=tap_offs,
                               tp=tp, tw=tw, cdt=compute_dtype)

    out = pl.pallas_call(
        kernel,
        out_shape=jax.ShapeDtypeStruct((B, C_out, Q_out), out_dtype),
        grid=(B, n_q),
        in_specs=[
            pl.BlockSpec((1, 1, C_in_p), lambda b, q: (b, 0, 0)),      # s
            pl.BlockSpec((1, C_out, 1), lambda b, q: (b, 0, 0)),       # demod scale
            pl.BlockSpec((1, C_out, 1), lambda b, q: (b, 0, 0)),       # bias * demod
            pl.BlockSpec((T, C_out, C_in_p), lambda b, q: (0, 0, 0)),  # weight (resident)
            pl.BlockSpec(memory_space=pl.ANY),                         # padded input (HBM)
        ],
        out_specs=pl.BlockSpec((1, C_out, tp), lambda b, q: (b, 0, q)),
        scratch_shapes=[
            pltpu.VMEM((T, C_out, C_in_p), compute_dtype),   # per-batch modulated weight
            pltpu.VMEM((2, C_in_p, tw), compute_dtype),      # double-buffered window
            pltpu.SemaphoreType.DMA((2,)),
        ],
        compiler_params=pltpu.CompilerParams(
            # B parallel (dual-TC on v7x when B >= 2); the P-tile axis must be
            # "arbitrary": the weight cache + window prefetch key on q == 0.
            # Weight is not double-buffer-worthy (constant index) but Buffered(1)
            # support is not relied upon; its 2nd buffer is in the budget.
            dimension_semantics=("parallel", "arbitrary"),
            vmem_limit_bytes=vmem_limit),
    )(s_in, d_in, bd_in, w_taps, xp_flat)

    # Drop padded-width garbage columns; pure reshape + slice, no transpose.
    out = out[:, :, :Q].reshape(B, C_out, Ho, Wp)[:, :, :, :Wo]
    return out


def _reference_forward(x, s, weight, bias, *, stride, padding, dilation, eps, demod):
    """Pure-JAX reference mirroring the PyTorch module exactly."""
    x_mod = x * s[:, :, None, None]
    y = jax.lax.conv_general_dilated(
        x_mod, weight, (stride, stride),
        [(padding, padding), (padding, padding)],
        rhs_dilation=(dilation, dilation),
        dimension_numbers=("NCHW", "OIHW", "NCHW"),
        precision=jax.lax.Precision.HIGHEST)
    y = y + bias[None, :, None, None]
    if demod:
        w_sq = jnp.sum(weight * weight, axis=(2, 3))          # (C_out, C_in)
        sigma = (s * s) @ w_sq.T                              # (B, C_out)
        y = y * (1.0 / jnp.sqrt(sigma + eps))[:, :, None, None]
    return y


if __name__ == "__main__":
    key = jax.random.PRNGKey(0)
    k1, k2, k3, k4 = jax.random.split(key, 4)

    B, C_in, C_out, H, W, ksz = 2, 4, 8, 16, 16, 3
    stride, padding, eps = 1, 1, 1e-6

    x = jax.random.normal(k1, (B, C_in, H, W), jnp.float32)
    s = 1.0 + 0.5 * jax.random.normal(k2, (B, C_in), jnp.float32)
    fan_in = float(C_in * ksz * ksz)
    weight = jax.random.normal(k3, (C_out, C_in, ksz, ksz), jnp.float32) / (fan_in ** 0.5)
    bias = 0.1 * jax.random.normal(k4, (C_out,), jnp.float32)

    y_ref = _reference_forward(x, s, weight, bias, stride=stride, padding=padding,
                               dilation=1, eps=eps, demod=True)
    y0_ref = _reference_forward(x, s, weight, bias, stride=stride, padding=padding,
                                dilation=1, eps=eps, demod=False)

    # exact-f32 operand path, demod on
    y = modulated_conv2d(x, s, weight, bias, stride=stride, padding=padding,
                         eps=eps, demod=True, compute_dtype=jnp.float32)
    y = jax.block_until_ready(y)
    assert y.shape == (B, C_out, H, W), y.shape
    assert jnp.allclose(y, y_ref, atol=1e-4, rtol=1e-4), (
        float(jnp.max(jnp.abs(y - y_ref))))

    # exact-f32 operand path, demod off
    y0 = modulated_conv2d(x, s, weight, bias, stride=stride, padding=padding,
                          eps=eps, demod=False, compute_dtype=jnp.float32)
    y0 = jax.block_until_ready(y0)
    assert jnp.allclose(y0, y0_ref, atol=3e-4, rtol=3e-4), (
        float(jnp.max(jnp.abs(y0 - y0_ref))))

    # default path: bf16 MXU operands, f32 accumulation / f32 demod math
    yb = modulated_conv2d(x, s, weight, bias, stride=stride, padding=padding,
                          eps=eps, demod=True)
    yb = jax.block_until_ready(yb)
    assert yb.shape == (B, C_out, H, W), yb.shape
    assert jnp.allclose(yb, y_ref, atol=7e-2, rtol=7e-2), (
        float(jnp.max(jnp.abs(yb - y_ref))))

    print("KERNEL_OK")
</pallas_src>

<mosaic_0001>
module attributes {stable_mosaic.version = 11 : i64} {
  func.func @_modconv_kernel(%arg0: i32, %arg1: i32, %arg2: memref<1x1x8xf32, #tpu.memory_space<vmem>>, %arg3: memref<1x8x1xf32, #tpu.memory_space<vmem>>, %arg4: memref<1x8x1xf32, #tpu.memory_space<vmem>>, %arg5: memref<9x8x8xf32, #tpu.memory_space<vmem>>, %arg6: memref<2x8x512xf32, #tpu.memory_space<any>>, %arg7: memref<1x8x384xf32, #tpu.memory_space<vmem>>, %arg8: memref<9x8x8xf32, #tpu.memory_space<vmem>>, %arg9: memref<2x8x512xf32, #tpu.memory_space<vmem>>, %arg10: memref<2x!tpu.dma_semaphore, #tpu.memory_space<semaphore_mem>>) attributes {dimension_semantics = [#tpu.dimension_semantics<parallel>, #tpu.dimension_semantics<arbitrary>], iteration_bounds = array<i64: 2, 1>, scalar_prefetch = 0 : i64, scratch_operands = 3 : i64, tpu.core_type = #tpu.core_type<tc>, window_params = [{transform_indices = @transform_0, window_bounds = array<i64: 1, 1, 8>}, {transform_indices = @transform_1, window_bounds = array<i64: 1, 8, 1>}, {transform_indices = @transform_2, window_bounds = array<i64: 1, 8, 1>}, {pipeline_mode = #tpu.pipeline_mode<synchronous>, transform_indices = @transform_3, window_bounds = array<i64: 9, 8, 8>}, {}, {transform_indices = @transform_5, window_bounds = array<i64: 1, 8, 384>}]} {
    %c2_i32 = arith.constant 2 : i32
    %c0_i32 = arith.constant 0 : i32
    %0 = arith.cmpi eq, %c2_i32, %c0_i32 : i32
    %c1_i32 = arith.constant 1 : i32
    %1 = arith.select %0, %c1_i32, %c2_i32 : i32
    %2 = arith.remsi %arg1, %1 : i32
    %c0_i32_0 = arith.constant 0 : i32
    %3 = arith.cmpi ne, %2, %c0_i32_0 : i32
    %c0_i32_1 = arith.constant 0 : i32
    %4 = arith.cmpi slt, %2, %c0_i32_1 : i32
    %c0_i32_2 = arith.constant 0 : i32
    %5 = arith.cmpi slt, %1, %c0_i32_2 : i32
    %6 = arith.xori %4, %5 : i1
    %7 = arith.andi %6, %3 : i1
    %8 = arith.addi %2, %1 : i32
    %9 = arith.select %7, %8, %2 : i32
    %c0_i32_3 = arith.constant 0 : i32
    %10 = arith.cmpi eq, %arg1, %c0_i32_3 : i32
    %11 = arith.extui %10 : i1 to i32
    %c0_i32_4 = arith.constant 0 : i32
    %12 = arith.cmpi ne, %11, %c0_i32_4 : i32
    scf.if %12 {
      %c0_i32_47 = arith.constant 0 : i32
      %c0_i32_48 = arith.constant 0 : i32
      %c0_i32_49 = arith.constant 0 : i32
      %c0_i32_50 = arith.constant 0 : i32
      %79 = tpu.memref_slice %arg6[%arg0, %c0_i32_49, %c0_i32_50] : memref<2x8x512xf32, #tpu.memory_space<any>> -> memref<1x8x512xf32, #tpu.memory_space<any>>
      %80 = tpu.memref_squeeze %79 : memref<1x8x512xf32, #tpu.memory_space<any>> -> memref<8x512xf32, #tpu.memory_space<any>>
      %c0_i32_51 = arith.constant 0 : i32
      %c0_i32_52 = arith.constant 0 : i32
      %81 = tpu.memref_slice %arg9[%c0_i32_47, %c0_i32_51, %c0_i32_52] : memref<2x8x512xf32, #tpu.memory_space<vmem>> -> memref<1x8x512xf32, #tpu.memory_space<vmem>>
      %82 = tpu.memref_squeeze %81 : memref<1x8x512xf32, #tpu.memory_space<vmem>> -> memref<8x512xf32, #tpu.memory_space<vmem>>
      %83 = tpu.memref_slice %arg10[%c0_i32_48] : memref<2x!tpu.dma_semaphore, #tpu.memory_space<semaphore_mem>> -> memref<1x!tpu.dma_semaphore, #tpu.memory_space<semaphore_mem>>
      %84 = tpu.memref_squeeze %83 : memref<1x!tpu.dma_semaphore, #tpu.memory_space<semaphore_mem>> -> memref<!tpu.dma_semaphore, #tpu.memory_space<semaphore_mem>>
      tpu.enqueue_dma source(%80 : memref<8x512xf32, #tpu.memory_space<any>>) target(%82 : memref<8x512xf32, #tpu.memory_space<vmem>>) target_semaphore(%84 : memref<!tpu.dma_semaphore, #tpu.memory_space<semaphore_mem>>)
      %c0_53 = arith.constant 0 : index
      %c0_54 = arith.constant 0 : index
      %c0_55 = arith.constant 0 : index
      %85 = vector.load %arg5[%c0_53, %c0_54, %c0_55] : memref<9x8x8xf32, #tpu.memory_space<vmem>>, vector<9x8x8xf32>
      %c0_56 = arith.constant 0 : index
      %c0_57 = arith.constant 0 : index
      %c0_58 = arith.constant 0 : index
      %86 = vector.load %arg2[%c0_56, %c0_57, %c0_58] : memref<1x1x8xf32, #tpu.memory_space<vmem>>, vector<1x1x8xf32>
      %87 = vector.shape_cast %86 : vector<1x1x8xf32> to vector<1x8xf32>
      %88 = vector.shape_cast %87 : vector<1x8xf32> to vector<1x1x8xf32>
      %89 = vector.broadcast %88 : vector<1x1x8xf32> to vector<9x8x8xf32>
      %90 = arith.mulf %85, %89 : vector<9x8x8xf32>
      %c0_59 = arith.constant 0 : index
      %c0_60 = arith.constant 0 : index
      %c0_61 = arith.constant 0 : index
      %91 = vector.load %arg3[%c0_59, %c0_60, %c0_61] : memref<1x8x1xf32, #tpu.memory_space<vmem>>, vector<1x8x1xf32>
      %92 = vector.shape_cast %91 : vector<1x8x1xf32> to vector<8x1xf32>
      %93 = vector.shape_cast %92 : vector<8x1xf32> to vector<1x8x1xf32>
      %94 = vector.broadcast %93 : vector<1x8x1xf32> to vector<9x8x8xf32>
      %95 = arith.mulf %90, %94 : vector<9x8x8xf32>
      %c0_62 = arith.constant 0 : index
      %c0_63 = arith.constant 0 : index
      %c0_64 = arith.constant 0 : index
      %96 = vector.load %arg8[%c0_62, %c0_63, %c0_64] : memref<9x8x8xf32, #tpu.memory_space<vmem>>, vector<9x8x8xf32>
      tpu.vector_store %arg8[%c0_62, %c0_63, %c0_64], %95 {strides = array<i32>} : memref<9x8x8xf32, #tpu.memory_space<vmem>>, vector<9x8x8xf32>,
    } else {
    }
    %c1_i32_5 = arith.constant 1 : i32
    %13 = arith.addi %arg1, %c1_i32_5 : i32
    %c1_i32_6 = arith.constant 1 : i32
    %14 = arith.cmpi slt, %13, %c1_i32_6 : i32
    %15 = arith.extui %14 : i1 to i32
    %c0_i32_7 = arith.constant 0 : i32
    %16 = arith.cmpi ne, %15, %c0_i32_7 : i32
    scf.if %16 {
      %c1_i32_47 = arith.constant 1 : i32
      %79 = arith.addi %arg1, %c1_i32_47 : i32
      %c1_i32_48 = arith.constant 1 : i32
      %80 = arith.subi %c1_i32_48, %9 : i32
      %c384_i32 = arith.constant 384 : i32
      %81 = arith.muli %79, %c384_i32 : i32
      %c0_i32_49 = arith.constant 0 : i32
      %82 = tpu.memref_slice %arg6[%arg0, %c0_i32_49, %81] : memref<2x8x512xf32, #tpu.memory_space<any>> -> memref<1x8x512xf32, #tpu.memory_space<any>>
      %83 = tpu.memref_squeeze %82 : memref<1x8x512xf32, #tpu.memory_space<any>> -> memref<8x512xf32, #tpu.memory_space<any>>
      %c0_i32_50 = arith.constant 0 : i32
      %c0_i32_51 = arith.constant 0 : i32
      %84 = tpu.memref_slice %arg9[%80, %c0_i32_50, %c0_i32_51] : memref<2x8x512xf32, #tpu.memory_space<vmem>> -> memref<1x8x512xf32, #tpu.memory_space<vmem>>
      %85 = tpu.memref_squeeze %84 : memref<1x8x512xf32, #tpu.memory_space<vmem>> -> memref<8x512xf32, #tpu.memory_space<vmem>>
      %86 = tpu.memref_slice %arg10[%80] : memref<2x!tpu.dma_semaphore, #tpu.memory_space<semaphore_mem>> -> memref<1x!tpu.dma_semaphore, #tpu.memory_space<semaphore_mem>>
      %87 = tpu.memref_squeeze %86 : memref<1x!tpu.dma_semaphore, #tpu.memory_space<semaphore_mem>> -> memref<!tpu.dma_semaphore, #tpu.memory_space<semaphore_mem>>
      tpu.enqueue_dma source(%83 : memref<8x512xf32, #tpu.memory_space<any>>) target(%85 : memref<8x512xf32, #tpu.memory_space<vmem>>) target_semaphore(%87 : memref<!tpu.dma_semaphore, #tpu.memory_space<semaphore_mem>>)
    } else {
    }
    %c0_i32_8 = arith.constant 0 : i32
    %c0_i32_9 = arith.constant 0 : i32
    %17 = tpu.memref_slice %arg6[%arg0, %c0_i32_8, %c0_i32_9] : memref<2x8x512xf32, #tpu.memory_space<any>> -> memref<1x8x512xf32, #tpu.memory_space<any>>
    %18 = tpu.memref_squeeze %17 : memref<1x8x512xf32, #tpu.memory_space<any>> -> memref<8x512xf32, #tpu.memory_space<any>>
    %c0_i32_10 = arith.constant 0 : i32
    %c0_i32_11 = arith.constant 0 : i32
    %19 = tpu.memref_slice %arg9[%9, %c0_i32_10, %c0_i32_11] : memref<2x8x512xf32, #tpu.memory_space<vmem>> -> memref<1x8x512xf32, #tpu.memory_space<vmem>>
    %20 = tpu.memref_squeeze %19 : memref<1x8x512xf32, #tpu.memory_space<vmem>> -> memref<8x512xf32, #tpu.memory_space<vmem>>
    %21 = tpu.memref_slice %arg10[%9] : memref<2x!tpu.dma_semaphore, #tpu.memory_space<semaphore_mem>> -> memref<1x!tpu.dma_semaphore, #tpu.memory_space<semaphore_mem>>
    %22 = tpu.memref_squeeze %21 : memref<1x!tpu.dma_semaphore, #tpu.memory_space<semaphore_mem>> -> memref<!tpu.dma_semaphore, #tpu.memory_space<semaphore_mem>>
    tpu.wait_dma2 semaphore(%22 : memref<!tpu.dma_semaphore, #tpu.memory_space<semaphore_mem>>) src(%18 : memref<8x512xf32, #tpu.memory_space<any>>) dst(%20 : memref<8x512xf32, #tpu.memory_space<vmem>>)
    %23 = arith.index_cast %9 : i32 to index
    %c0 = arith.constant 0 : index
    %c0_12 = arith.constant 0 : index
    %24 = vector.load %arg9[%23, %c0, %c0_12] : memref<2x8x512xf32, #tpu.memory_space<vmem>>, vector<1x8x512xf32>
    %25 = vector.shape_cast %24 : vector<1x8x512xf32> to vector<8x512xf32>
    %cst = arith.constant 0.000000e+00 : f32
    %26 = vector.broadcast %cst : f32 to vector<8x384xf32>
    %27 = vector.extract_strided_slice %25 {offsets = [0, 0], sizes = [8, 384], strides = [1, 1]} : vector<8x512xf32> to vector<8x384xf32>
    %c0_13 = arith.constant 0 : index
    %c0_14 = arith.constant 0 : index
    %c0_15 = arith.constant 0 : index
    %28 = vector.load %arg8[%c0_13, %c0_14, %c0_15] : memref<9x8x8xf32, #tpu.memory_space<vmem>>, vector<1x8x8xf32>
    %29 = vector.shape_cast %28 : vector<1x8x8xf32> to vector<8x8xf32>
    %cst_16 = arith.constant dense<0.000000e+00> : vector<8x384xf32>
    %30 = tpu.matmul %29, %27, %cst_16 {dimension_numbers = #tpu.dot_dimension_numbers<[1], [0], [0], [1], [0, 0, 1, 1], [], []>} : vector<8x8xf32>, vector<8x384xf32>, vector<8x384xf32> -> vector<8x384xf32>
    %31 = arith.addf %26, %30 : vector<8x384xf32>
    %32 = vector.extract_strided_slice %25 {offsets = [0, 1], sizes = [8, 384], strides = [1, 1]} : vector<8x512xf32> to vector<8x384xf32>
    %c1 = arith.constant 1 : index
    %c0_17 = arith.constant 0 : index
    %c0_18 = arith.constant 0 : index
    %33 = vector.load %arg8[%c1, %c0_17, %c0_18] : memref<9x8x8xf32, #tpu.memory_space<vmem>>, vector<1x8x8xf32>
    %34 = vector.shape_cast %33 : vector<1x8x8xf32> to vector<8x8xf32>
    %cst_19 = arith.constant dense<0.000000e+00> : vector<8x384xf32>
    %35 = tpu.matmul %34, %32, %cst_19 {dimension_numbers = #tpu.dot_dimension_numbers<[1], [0], [0], [1], [0, 0, 1, 1], [], []>} : vector<8x8xf32>, vector<8x384xf32>, vector<8x384xf32> -> vector<8x384xf32>
    %36 = arith.addf %31, %35 : vector<8x384xf32>
    %37 = vector.extract_strided_slice %25 {offsets = [0, 2], sizes = [8, 384], strides = [1, 1]} : vector<8x512xf32> to vector<8x384xf32>
    %c2 = arith.constant 2 : index
    %c0_20 = arith.constant 0 : index
    %c0_21 = arith.constant 0 : index
    %38 = vector.load %arg8[%c2, %c0_20, %c0_21] : memref<9x8x8xf32, #tpu.memory_space<vmem>>, vector<1x8x8xf32>
    %39 = vector.shape_cast %38 : vector<1x8x8xf32> to vector<8x8xf32>
    %cst_22 = arith.constant dense<0.000000e+00> : vector<8x384xf32>
    %40 = tpu.matmul %39, %37, %cst_22 {dimension_numbers = #tpu.dot_dimension_numbers<[1], [0], [0], [1], [0, 0, 1, 1], [], []>} : vector<8x8xf32>, vector<8x384xf32>, vector<8x384xf32> -> vector<8x384xf32>
    %41 = arith.addf %36, %40 : vector<8x384xf32>
    %42 = vector.extract_strided_slice %25 {offsets = [0, 18], sizes = [8, 384], strides = [1, 1]} : vector<8x512xf32> to vector<8x384xf32>
    %c3 = arith.constant 3 : index
    %c0_23 = arith.constant 0 : index
    %c0_24 = arith.constant 0 : index
    %43 = vector.load %arg8[%c3, %c0_23, %c0_24] : memref<9x8x8xf32, #tpu.memory_space<vmem>>, vector<1x8x8xf32>
    %44 = vector.shape_cast %43 : vector<1x8x8xf32> to vector<8x8xf32>
    %cst_25 = arith.constant dense<0.000000e+00> : vector<8x384xf32>
    %45 = tpu.matmul %44, %42, %cst_25 {dimension_numbers = #tpu.dot_dimension_numbers<[1], [0], [0], [1], [0, 0, 1, 1], [], []>} : vector<8x8xf32>, vector<8x384xf32>, vector<8x384xf32> -> vector<8x384xf32>
    %46 = arith.addf %41, %45 : vector<8x384xf32>
    %47 = vector.extract_strided_slice %25 {offsets = [0, 19], sizes = [8, 384], strides = [1, 1]} : vector<8x512xf32> to vector<8x384xf32>
    %c4 = arith.constant 4 : index
    %c0_26 = arith.constant 0 : index
    %c0_27 = arith.constant 0 : index
    %48 = vector.load %arg8[%c4, %c0_26, %c0_27] : memref<9x8x8xf32, #tpu.memory_space<vmem>>, vector<1x8x8xf32>
    %49 = vector.shape_cast %48 : vector<1x8x8xf32> to vector<8x8xf32>
    %cst_28 = arith.constant dense<0.000000e+00> : vector<8x384xf32>
    %50 = tpu.matmul %49, %47, %cst_28 {dimension_numbers = #tpu.dot_dimension_numbers<[1], [0], [0], [1], [0, 0, 1, 1], [], []>} : vector<8x8xf32>, vector<8x384xf32>, vector<8x384xf32> -> vector<8x384xf32>
    %51 = arith.addf %46, %50 : vector<8x384xf32>
    %52 = vector.extract_strided_slice %25 {offsets = [0, 20], sizes = [8, 384], strides = [1, 1]} : vector<8x512xf32> to vector<8x384xf32>
    %c5 = arith.constant 5 : index
    %c0_29 = arith.constant 0 : index
    %c0_30 = arith.constant 0 : index
    %53 = vector.load %arg8[%c5, %c0_29, %c0_30] : memref<9x8x8xf32, #tpu.memory_space<vmem>>, vector<1x8x8xf32>
    %54 = vector.shape_cast %53 : vector<1x8x8xf32> to vector<8x8xf32>
    %cst_31 = arith.constant dense<0.000000e+00> : vector<8x384xf32>
    %55 = tpu.matmul %54, %52, %cst_31 {dimension_numbers = #tpu.dot_dimension_numbers<[1], [0], [0], [1], [0, 0, 1, 1], [], []>} : vector<8x8xf32>, vector<8x384xf32>, vector<8x384xf32> -> vector<8x384xf32>
    %56 = arith.addf %51, %55 : vector<8x384xf32>
    %57 = vector.extract_strided_slice %25 {offsets = [0, 36], sizes = [8, 384], strides = [1, 1]} : vector<8x512xf32> to vector<8x384xf32>
    %c6 = arith.constant 6 : index
    %c0_32 = arith.constant 0 : index
    %c0_33 = arith.constant 0 : index
    %58 = vector.load %arg8[%c6, %c0_32, %c0_33] : memref<9x8x8xf32, #tpu.memory_space<vmem>>, vector<1x8x8xf32>
    %59 = vector.shape_cast %58 : vector<1x8x8xf32> to vector<8x8xf32>
    %cst_34 = arith.constant dense<0.000000e+00> : vector<8x384xf32>
    %60 = tpu.matmul %59, %57, %cst_34 {dimension_numbers = #tpu.dot_dimension_numbers<[1], [0], [0], [1], [0, 0, 1, 1], [], []>} : vector<8x8xf32>, vector<8x384xf32>, vector<8x384xf32> -> vector<8x384xf32>
    %61 = arith.addf %56, %60 : vector<8x384xf32>
    %62 = vector.extract_strided_slice %25 {offsets = [0, 37], sizes = [8, 384], strides = [1, 1]} : vector<8x512xf32> to vector<8x384xf32>
    %c7 = arith.constant 7 : index
    %c0_35 = arith.constant 0 : index
    %c0_36 = arith.constant 0 : index
    %63 = vector.load %arg8[%c7, %c0_35, %c0_36] : memref<9x8x8xf32, #tpu.memory_space<vmem>>, vector<1x8x8xf32>
    %64 = vector.shape_cast %63 : vector<1x8x8xf32> to vector<8x8xf32>
    %cst_37 = arith.constant dense<0.000000e+00> : vector<8x384xf32>
    %65 = tpu.matmul %64, %62, %cst_37 {dimension_numbers = #tpu.dot_dimension_numbers<[1], [0], [0], [1], [0, 0, 1, 1], [], []>} : vector<8x8xf32>, vector<8x384xf32>, vector<8x384xf32> -> vector<8x384xf32>
    %66 = arith.addf %61, %65 : vector<8x384xf32>
    %67 = vector.extract_strided_slice %25 {offsets = [0, 38], sizes = [8, 384], strides = [1, 1]} : vector<8x512xf32> to vector<8x384xf32>
    %c8 = arith.constant 8 : index
    %c0_38 = arith.constant 0 : index
    %c0_39 = arith.constant 0 : index
    %68 = vector.load %arg8[%c8, %c0_38, %c0_39] : memref<9x8x8xf32, #tpu.memory_space<vmem>>, vector<1x8x8xf32>
    %69 = vector.shape_cast %68 : vector<1x8x8xf32> to vector<8x8xf32>
    %cst_40 = arith.constant dense<0.000000e+00> : vector<8x384xf32>
    %70 = tpu.matmul %69, %67, %cst_40 {dimension_numbers = #tpu.dot_dimension_numbers<[1], [0], [0], [1], [0, 0, 1, 1], [], []>} : vector<8x8xf32>, vector<8x384xf32>, vector<8x384xf32> -> vector<8x384xf32>
    %71 = arith.addf %66, %70 : vector<8x384xf32>
    %c0_41 = arith.constant 0 : index
    %c0_42 = arith.constant 0 : index
    %c0_43 = arith.constant 0 : index
    %72 = vector.load %arg4[%c0_41, %c0_42, %c0_43] : memref<1x8x1xf32, #tpu.memory_space<vmem>>, vector<1x8x1xf32>
    %73 = vector.shape_cast %72 : vector<1x8x1xf32> to vector<8x1xf32>
    %74 = vector.broadcast %73 : vector<8x1xf32> to vector<8x384xf32>
    %75 = arith.addf %71, %74 : vector<8x384xf32>
    %c0_44 = arith.constant 0 : index
    %c0_45 = arith.constant 0 : index
    %c0_46 = arith.constant 0 : index
    %76 = vector.load %arg7[%c0_44, %c0_45, %c0_46] : memref<1x8x384xf32, #tpu.memory_space<vmem>>, vector<1x8x384xf32>
    %77 = vector.shape_cast %76 : vector<1x8x384xf32> to vector<8x384xf32>
    %78 = vector.shape_cast %75 : vector<8x384xf32> to vector<1x8x384xf32>
    tpu.vector_store %arg7[%c0_44, %c0_45, %c0_46], %78 {strides = array<i32>} : memref<1x8x384xf32, #tpu.memory_space<vmem>>, vector<1x8x384xf32>,
    return
  }
  func.func @transform_0(%arg0: i32, %arg1: i32) -> (i32, i32, i32) {
    %c0_i32 = arith.constant 0 : i32
    %c0_i32_0 = arith.constant 0 : i32
    %c0_i32_1 = arith.constant 0 : i32
    return %arg0, %c0_i32, %c0_i32_0 : i32, i32, i32
  }
  func.func @transform_1(%arg0: i32, %arg1: i32) -> (i32, i32, i32) {
    %c0_i32 = arith.constant 0 : i32
    %c0_i32_0 = arith.constant 0 : i32
    %c0_i32_1 = arith.constant 0 : i32
    return %arg0, %c0_i32, %c0_i32_0 : i32, i32, i32
  }
  func.func @transform_2(%arg0: i32, %arg1: i32) -> (i32, i32, i32) {
    %c0_i32 = arith.constant 0 : i32
    %c0_i32_0 = arith.constant 0 : i32
    %c0_i32_1 = arith.constant 0 : i32
    return %arg0, %c0_i32, %c0_i32_0 : i32, i32, i32
  }
  func.func @transform_3(%arg0: i32, %arg1: i32) -> (i32, i32, i32) {
    %c0_i32 = arith.constant 0 : i32
    %c0_i32_0 = arith.constant 0 : i32
    %c0_i32_1 = arith.constant 0 : i32
    %c0_i32_2 = arith.constant 0 : i32
    return %c0_i32, %c0_i32_0, %c0_i32_1 : i32, i32, i32
  }
  func.func @transform_5(%arg0: i32, %arg1: i32) -> (i32, i32, i32) {
    %c0_i32 = arith.constant 0 : i32
    %c0_i32_0 = arith.constant 0 : i32
    return %arg0, %c0_i32, %arg1 : i32, i32, i32
  }
}

</mosaic_0001>

<llo_original>
// kernel: tpu_custom_call.1
$region0: #{tpu_custom_call.1}
  #allocation0 [shape = 'u32[]', space=smem, size = 0x4, offset = 0x4, fixed_abs, tag = 'smem constant byte address 0x4 - core index']
  #allocation1 [shape = 'u32[144,128]{1,0:T(1,128)}', space=vmem, size = 0x12000, scoped, tag = 'internal scratch']
  #allocation2 [shape = 'f32[9,8,8]{2,1,0:T(8,128)}', space=vmem, size = 0x9000, scoped, tag = 'scratch operand']
  #allocation3 [shape = 'f32[2,8,512]{2,1,0:T(8,128)}', space=vmem, size = 0x8000, scoped, tag = 'scratch operand']
  #allocation4 [shape = 's32[2]{0}', space=sflag, size = 0x8, scoped, tag = 'scratch operand']
  #allocation7 [shape = 's32[]', space=sflag, size = 0x4, offset = 0, fixed_abs, tag = 'sflag constant byte address 0x0 - dummy sync flag']
  #allocation8 [shape = 's32[]', space=sflag, size = 0x4, offset = 0, fixed_abs, tag = 'sflag constant byte address 0x0 - dummy sync flag']
  %s0 = inlined_call_operand.vmem [shape: f32[2,1,8], index: 0, kind: input, shape index: {}]
  %s1 = inlined_call_operand.vmem [shape: f32[2,8,1], index: 1, kind: input, shape index: {}]
  %s2 = inlined_call_operand.vmem [shape: f32[2,8,1], index: 2, kind: input, shape index: {}]
  %s3 = inlined_call_operand.vmem [shape: f32[9,8,8], index: 3, kind: input, shape index: {}]
  %s4 = inlined_call_operand.vmem [shape: f32[2,8,512], index: 4, kind: input, shape index: {}]
  %s5 = inlined_call_operand.hbm [shape: f32[2,8,384], index: 5, kind: output, shape index: {}]
  %s6 = sld [smem:[#allocation0]]
  $region125: #{tpu_custom_call.1} parent=0
    _
  %s8 = ssub.s32 1, %s6
  %s9 = scalar_select 0, %s8, %s6
  $region1: #{tpu_custom_call.1} parent=0
    #allocation5 [shape = 'u8[24576]{0}', space=vmem, size = 0x6000, scoped, tag = 'output window, operand 0']
    #allocation6 [shape = 's32[2]{0}', space=sflag, size = 0x8, scoped, tag = 'scoped memory for tpu_custom_call.1']
    %10 = vsyncpa [#allocation6], 0
    %s11 = scalar_lea.sflag [#allocation6], 1
    %12 = vsyncpa %s11, 0
    loop: start=0, step=1, limit=4
    $region2: #{tpu_custom_call.1} parent=1 // loop_pre_header
      _
    $region3: #{tpu_custom_call.1} parent=1 // loop_header
      %s14 = sphi 0, %s18
      %p15 = scmp.ge.s32.totalorder %s14, 4
      %s21 = sphi 0, %s33
      %s22 = sphi 0, %s29
      %s23 = sphi 0, %s21
      %s24 = sphi 0, %s22
      %s25 = sphi 0, %s23
      %s26 = sphi 0, %s24
      %s36 = sphi 0, %s38
      %s39 = sphi 0, %s36
      %s40 = sphi 0, %s39
      %s56 = sphi 0, %s40
      %s62 = sphi 0, %s64
      %s65 = sphi 0, %s62
      %s66 = sphi 0, %s65
      %s82 = sphi 0, %s66
      %s88 = sphi 0, %s90
      %s91 = sphi 0, %s88
      %s92 = sphi 0, %s91
      %s108 = sphi 0, %s92
      %s112 = sphi 0, %s112
      %s114 = sphi 0, %s112
      %s115 = sphi 0, %s114
      %s129 = sphi 0, %s115
      %s137 = sphi 0, %s139
      %s140 = sphi 0, %s137
      %s141 = sphi 0, %s140
      %s157 = sphi 0, %s141
    $region4: #{tpu_custom_call.1} parent=1 // loop_header_branch
      %17 = sbr.rel (%p15) target = $region8
    $region5: #{tpu_custom_call.1} parent=1 // loop_body
      %s19 = ssub.s32 %s14, 1
      %s20 = ssub.s32 %s14, 2
      %s27 = sadd.s32 1, %s22
      %p28 = scmp.ge.s32.totalorder %s27, 1
      %s29 = scalar_select %p28, 0, %s27
      %s30 = sadd.s32 1, %s21
      %s31 = scalar_select %p28, %s30, %s21
      %p32 = scmp.ge.s32.totalorder %s31, 2
      %s33 = scalar_select %p32, 0, %s31
      %s34 = ssub.s32 %s21, %s33
      %p35 = scmp.eq.s32.totalorder %s34, 0
      %s37 = sadd.s32 %s36, 1
      %s38 = scalar_select %p35, %s36, %s37
      %p41 = pneg %p35
      %p42 = scmp.eq.s32.totalorder %s14, 1
      %p43 = por %p41, %p42
      %p44 = scmp.ne.s32.totalorder %s36, %s39
      %p45 = scmp.eq.s32.totalorder %s14, 0
      %p46 = por %p44, %p45
      %p47 = scmp.ne.s32.totalorder %s36, %s39
      %p48 = scmp.eq.s32.totalorder %s19, 1
      %p49 = por %p47, %p48
      %p50 = scmp.ne.s32.totalorder %s39, %s40
      %p51 = scmp.eq.s32.totalorder %s19, 0
      %p52 = por %p50, %p51
      %p53 = scmp.ne.s32.totalorder %s39, %s40
      %p54 = scmp.eq.s32.totalorder %s20, 1
      %p55 = por %p53, %p54
      %p57 = scmp.ne.s32.totalorder %s40, %s56
      %p58 = scmp.eq.s32.totalorder %s20, 0
      %p59 = por %p57, %p58
      %s60 = ssub.s32 %s21, %s33
      %p61 = scmp.eq.s32.totalorder %s60, 0
      %s63 = sadd.s32 %s62, 1
      %s64 = scalar_select %p61, %s62, %s63
      %p67 = pneg %p61
      %p68 = scmp.eq.s32.totalorder %s14, 1
      %p69 = por %p67, %p68
      %p70 = scmp.ne.s32.totalorder %s62, %s65
      %p71 = scmp.eq.s32.totalorder %s14, 0
      %p72 = por %p70, %p71
      %p73 = scmp.ne.s32.totalorder %s62, %s65
      %p74 = scmp.eq.s32.totalorder %s19, 1
      %p75 = por %p73, %p74
      %p76 = scmp.ne.s32.totalorder %s65, %s66
      %p77 = scmp.eq.s32.totalorder %s19, 0
      %p78 = por %p76, %p77
      %p79 = scmp.ne.s32.totalorder %s65, %s66
      %p80 = scmp.eq.s32.totalorder %s20, 1
      %p81 = por %p79, %p80
      %p83 = scmp.ne.s32.totalorder %s66, %s82
      %p84 = scmp.eq.s32.totalorder %s20, 0
      %p85 = por %p83, %p84
      %s86 = ssub.s32 %s21, %s33
      %p87 = scmp.eq.s32.totalorder %s86, 0
      %s89 = sadd.s32 %s88, 1
      %s90 = scalar_select %p87, %s88, %s89
      %p93 = pneg %p87
      %p94 = scmp.eq.s32.totalorder %s14, 1
      %p95 = por %p93, %p94
      %p96 = scmp.ne.s32.totalorder %s88, %s91
      %p97 = scmp.eq.s32.totalorder %s14, 0
      %p98 = por %p96, %p97
      %p99 = scmp.ne.s32.totalorder %s88, %s91
      %p100 = scmp.eq.s32.totalorder %s19, 1
      %p101 = por %p99, %p100
      %p102 = scmp.ne.s32.totalorder %s91, %s92
      %p103 = scmp.eq.s32.totalorder %s19, 0
      %p104 = por %p102, %p103
      %p105 = scmp.ne.s32.totalorder %s91, %s92
      %p106 = scmp.eq.s32.totalorder %s20, 1
      %p107 = por %p105, %p106
      %p109 = scmp.ne.s32.totalorder %s92, %s108
      %p110 = scmp.eq.s32.totalorder %s20, 0
      %p111 = por %p109, %p110
      %s113 = sadd.s32 %s112, 1
      %p116 = scmp.eq.s32.totalorder %s14, 1
      %p117 = scmp.ne.s32.totalorder %s112, %s114
      %p118 = scmp.eq.s32.totalorder %s14, 0
      %p119 = por %p117, %p118
      %p120 = scmp.ne.s32.totalorder %s112, %s114
      %p121 = scmp.eq.s32.totalorder %s19, 1
      %p122 = por %p120, %p121
      %p123 = scmp.ne.s32.totalorder %s114, %s115
      %p124 = scmp.eq.s32.totalorder %s19, 0
      %p125 = por %p123, %p124
      %p126 = scmp.ne.s32.totalorder %s114, %s115
      %p127 = scmp.eq.s32.totalorder %s20, 1
      %p128 = por %p126, %p127
      %p130 = scmp.ne.s32.totalorder %s115, %s129
      %p131 = scmp.eq.s32.totalorder %s20, 0
      %p132 = por %p130, %p131
      %s133 = ssub.s32 %s21, %s33
      %s134 = ssub.s32 %s22, %s29
      %s135 = sor.u32 %s133, %s134
      %p136 = scmp.eq.s32.totalorder %s135, 0
      %s138 = sadd.s32 %s137, 1
      %s139 = scalar_select %p136, %s137, %s138
      %p142 = pneg %p136
      %p143 = scmp.eq.s32.totalorder %s14, 1
      %p144 = por %p142, %p143
      %p145 = scmp.ne.s32.totalorder %s137, %s140
      %p146 = scmp.eq.s32.totalorder %s14, 0
      %p147 = por %p145, %p146
      %p148 = scmp.ne.s32.totalorder %s137, %s140
      %p149 = scmp.eq.s32.totalorder %s19, 1
      %p150 = por %p148, %p149
      %p151 = scmp.ne.s32.totalorder %s140, %s141
      %p152 = scmp.eq.s32.totalorder %s19, 0
      %p153 = por %p151, %p152
      %p154 = scmp.ne.s32.totalorder %s140, %s141
      %p155 = scmp.eq.s32.totalorder %s20, 1
      %p156 = por %p154, %p155
      %p158 = scmp.ne.s32.totalorder %s141, %s157
      %p159 = scmp.eq.s32.totalorder %s20, 0
      %p160 = por %p158, %p159
      %p161 = scmp.le.s32.totalorder 1, %s14
      %p162 = scmp.lt.s32.totalorder %s14, 3
      %p163 = pnand %p161, %p162
      %p164 = pneg %p163
      // Predicated region
      $region9: #{tpu_custom_call.1} parent=5 // pred_check
        _
      $region10: #{tpu_custom_call.1} parent=5 // pred_check_branch
        %166 = sbr.rel (%p163) target = $region12
      $region11: #{tpu_custom_call.1} parent=5 // pred_region
        %s167 = ssub.s32 %s14, 1
        // Predicated region
        $region13: #{tpu_custom_call.1} parent=11 // pred_check
          %p168 = pneg %p125
        $region14: #{tpu_custom_call.1} parent=11 // pred_check_branch
          %170 = sbr.rel (%p168) target = $region16
        $region15: #{tpu_custom_call.1} parent=11 // pred_region
          _
        $region16: #{tpu_custom_call.1} parent=11 // pred_fallthru
          _
      $region12: #{tpu_custom_call.1} parent=5 // pred_fallthru
        _
      %p171 = scmp.lt.s32.totalorder %s14, 2
      // Predicated region
      $region17: #{tpu_custom_call.1} parent=5 // pred_check
        %p172 = pneg %p171
      $region18: #{tpu_custom_call.1} parent=5 // pred_check_branch
        %174 = sbr.rel (%p172) target = $region20
      $region19: #{tpu_custom_call.1} parent=5 // pred_region
        // Predicated region
        $region21: #{tpu_custom_call.1} parent=19 // pred_check
          %p175 = pneg %p46
        $region22: #{tpu_custom_call.1} parent=19 // pred_check_branch
          %177 = sbr.rel (%p175) target = $region24
        $region23: #{tpu_custom_call.1} parent=19 // pred_region
          %p178 = scmp.lt.s32.totalorder %s21, 1
          %s179 = scalar_select %p178, %s21, 1
          %s180 = scalar_lea.vmem %s0, %s179
        $region24: #{tpu_custom_call.1} parent=19 // pred_fallthru
          _
        // Predicated region
        $region25: #{tpu_custom_call.1} parent=19 // pred_check
          %p181 = pneg %p72
        $region26: #{tpu_custom_call.1} parent=19 // pred_check_branch
          %183 = sbr.rel (%p181) target = $region28
        $region27: #{tpu_custom_call.1} parent=19 // pred_region
          %p184 = scmp.lt.s32.totalorder %s21, 1
          %s185 = scalar_select %p184, %s21, 1
          %s186 = smul.addr %s185, 8
          %s187 = scalar_lea.vmem %s1, %s186
        $region28: #{tpu_custom_call.1} parent=19 // pred_fallthru
          _
        // Predicated region
        $region29: #{tpu_custom_call.1} parent=19 // pred_check
          %p188 = pneg %p98
        $region30: #{tpu_custom_call.1} parent=19 // pred_check_branch
          %190 = sbr.rel (%p188) target = $region32
        $region31: #{tpu_custom_call.1} parent=19 // pred_region
          %p191 = scmp.lt.s32.totalorder %s21, 1
          %s192 = scalar_select %p191, %s21, 1
          %s193 = smul.addr %s192, 8
          %s194 = scalar_lea.vmem %s2, %s193
        $region32: #{tpu_custom_call.1} parent=19 // pred_fallthru
          _
      $region20: #{tpu_custom_call.1} parent=5 // pred_fallthru
        _
      %p195 = scmp.le.s32.totalorder 1, %s14
      %p196 = scmp.lt.s32.totalorder %s14, 3
      %p197 = pnand %p195, %p196
      %p198 = pneg %p197
      // Predicated region
      $region33: #{tpu_custom_call.1} parent=5 // pred_check
        _
      $region34: #{tpu_custom_call.1} parent=5 // pred_check_branch
        %200 = sbr.rel (%p197) target = $region36
      $region35: #{tpu_custom_call.1} parent=5 // pred_region
        %s201 = ssub.s32 %s14, 1
        %p202 = scmp.lt.s32.totalorder %s23, 1
        %s203 = scalar_select %p202, %s23, 1
        %s204 = scalar_lea.vmem %s0, %s203
        %p205 = pneg %p52
        %p206 = pneg %p49
        %p207 = scmp.lt.s32.totalorder %s23, 1
        %s208 = scalar_select %p207, %s23, 1
        %s209 = smul.addr %s208, 8
        %s210 = scalar_lea.vmem %s1, %s209
        %p211 = pneg %p78
        %p212 = pneg %p75
        %p213 = scmp.lt.s32.totalorder %s23, 1
        %s214 = scalar_select %p213, %s23, 1
        %s215 = smul.addr %s214, 8
        %s216 = scalar_lea.vmem %s2, %s215
        %p217 = pneg %p104
        %p218 = pneg %p101
        %p219 = pneg %p125
        %p220 = pneg %p122
        %p221 = pneg %p153
        %p222 = pneg %p150
        %s223 = sand.u32 %s140, 1
        %s224 = scalar_lea.sflag [#allocation6], %s223
        %s225 = sand.u32 %s140, 1
        %s226 = smul.addr %s225, 24
        %s227 = scalar_lea.vmem [#allocation5], %s226
        %p228 = scmp.lt.s32.totalorder %s23, 1
        %s229 = scalar_select %p228, %s23, 1
        %s230 = scalar_lea.vmem %s0, %s229
        %p231 = scmp.lt.s32.totalorder %s23, 1
        %s232 = scalar_select %p231, %s23, 1
        %s233 = smul.addr %s232, 8
        %s234 = scalar_lea.vmem %s1, %s233
        %p235 = scmp.lt.s32.totalorder %s23, 1
        %s236 = scalar_select %p235, %s23, 1
        %s237 = smul.addr %s236, 8
        %s238 = scalar_lea.vmem %s2, %s237
        %s239 = smul.u32 3, %s24
        %p240 = scmp.lt.s32.totalorder %s24, 0
        %s241 = ssub.s32 0, %s24
        %s242 = scalar_select %p240, %s241, %s24
        %s243 = sand.u32 %s242, 1
        %s244 = ssub.s32 0, %s243
        %s245 = scalar_select %p240, %s244, %s243
        %p246 = scmp.ne.s32.totalorder %s245, 0
        %p247 = scmp.lt.s32.totalorder %s245, 0
        %p248 = pnand %p247, %p246
        %p249 = pneg %p248
        %s250 = sadd.s32 %s245, 2
        %s251 = scalar_select %p249, %s250, %s245
        %p252 = scmp.eq.s32.totalorder %s24, 0
        // Predicated region
        $region37: #{tpu_custom_call.1} parent=35 // pred_check
          %p253 = pneg %p252
        $region38: #{tpu_custom_call.1} parent=35 // pred_check_branch
          %255 = sbr.rel (%p253) target = $region40
        $region39: #{tpu_custom_call.1} parent=35 // pred_region
          %s256 = smul.u32 %s23, 4
          %s257 = smul.addr %s256, 8
          %s258 = scalar_lea.vmem %s4, %s257
          %p260 = scmp.lt.u32.totalorder 32, 8
          %p261 = pneg %p260
          // Predicated region
          $region41: #{tpu_custom_call.1} parent=39 // pred_check
            _
          $region42: #{tpu_custom_call.1} parent=39 // pred_check_branch
            %263 = sbr.rel (%p260) target = $region44
          $region43: #{tpu_custom_call.1} parent=39 // pred_region
            %s278 = sand.u32 32, 7
            %p279 = scmp.eq.s32.totalorder %s278, 0
            // Predicated region
            $region56: #{tpu_custom_call.1} parent=43 // pred_check
              %p280 = pneg %p279
            $region57: #{tpu_custom_call.1} parent=43 // pred_check_branch
              %282 = sbr.rel (%p280) target = $region59
            $region58: #{tpu_custom_call.1} parent=43 // pred_region
              loop: start=0, step=1, limit=1
              $region60: #{tpu_custom_call.1} parent=58 // loop_pre_header
                _
              $region61: #{tpu_custom_call.1} parent=58 // loop_header
                %s284 = sphi 0, %s288
                %p285 = scmp.ge.s32.totalorder %s284, 1
                %s289 = sphi %s258, %s258
                %s290 = sphi [#allocation3], [#allocation3]
              $region62: #{tpu_custom_call.1} parent=58 // loop_header_branch
                %287 = sbr.rel (%p285) target = $region66
              $region63: #{tpu_custom_call.1} parent=58 // loop_body
                %v291 = vld [vmem:[%s289] sm:$0xff]
                %292 = vst [vmem:[%s290] sm:$0xff] %v291
                %v293 = vld [vmem:[%s289 + $0x8] sm:$0xff]
                %294 = vst [vmem:[%s290 + $0x8] sm:$0xff] %v293
                %v295 = vld [vmem:[%s289 + $0x10] sm:$0xff]
                %296 = vst [vmem:[%s290 + $0x10] sm:$0xff] %v295
                %v297 = vld [vmem:[%s289 + $0x18] sm:$0xff]
                %298 = vst [vmem:[%s290 + $0x18] sm:$0xff] %v297
              $region64: #{tpu_custom_call.1} parent=58 // loop_footer
                %s288 = sadd.s32 1, %s284
              $region65: #{tpu_custom_call.1} parent=58 // loop_footer_branch
                %283 = sbr.rel target = $region61
              $region66: #{tpu_custom_call.1} parent=58 // loop_exit
                _
            $region59: #{tpu_custom_call.1} parent=43 // pred_fallthru
              _
            %p299 = pneg %p279
            // Predicated region
            $region67: #{tpu_custom_call.1} parent=43 // pred_check
              _
            $region68: #{tpu_custom_call.1} parent=43 // pred_check_branch
              %301 = sbr.rel (%p279) target = $region70
            $region69: #{tpu_custom_call.1} parent=43 // pred_region
              %s302 = sand.u32 32, 7
            $region70: #{tpu_custom_call.1} parent=43 // pred_fallthru
              _
          $region44: #{tpu_custom_call.1} parent=39 // pred_fallthru
            _
          // Predicated region
          $region45: #{tpu_custom_call.1} parent=39 // pred_check
            %p264 = pneg %p260
          $region46: #{tpu_custom_call.1} parent=39 // pred_check_branch
            %266 = sbr.rel (%p264) target = $region48
          $region47: #{tpu_custom_call.1} parent=39 // pred_region
            %s267 = sshllo.u32 0, 32
            loop: start=0, step=1, limit=1
            $region49: #{tpu_custom_call.1} parent=47 // loop_pre_header
              _
            $region50: #{tpu_custom_call.1} parent=47 // loop_header
              %s269 = sphi 0, %s273
              %p270 = scmp.ge.s32.totalorder %s269, 1
              %s274 = sphi %s258, %s258
              %s275 = sphi [#allocation3], [#allocation3]
            $region51: #{tpu_custom_call.1} parent=47 // loop_header_branch
              %272 = sbr.rel (%p270) target = $region55
            $region52: #{tpu_custom_call.1} parent=47 // loop_body
              %v276 = vld [vmem:[%s274] sm:%s267]
              %277 = vst [vmem:[%s275] sm:%s267] %v276
            $region53: #{tpu_custom_call.1} parent=47 // loop_footer
              %s273 = sadd.s32 1, %s269
            $region54: #{tpu_custom_call.1} parent=47 // loop_footer_branch
              %268 = sbr.rel target = $region50
            $region55: #{tpu_custom_call.1} parent=47 // loop_exit
              _
          $region48: #{tpu_custom_call.1} parent=39 // pred_fallthru
            _
          // Predicated region
          $region71: #{tpu_custom_call.1} parent=39 // pred_check
            _
          $region72: #{tpu_custom_call.1} parent=39 // pred_check_branch
            %305 = sbr.rel (0) target = $region74
          $region73: #{tpu_custom_call.1} parent=39 // pred_region
            %306 = vsyncadd [#allocation4], 512
          $region74: #{tpu_custom_call.1} parent=39 // pred_fallthru
            _
          %v307 = vld [vmem:[%s3] sm:$0xff]
          %v308 = vld [vmem:[%s3 + $0x8] sm:$0xff]
          %v309 = vld [vmem:[%s3 + $0x10] sm:$0xff]
          %v310 = vld [vmem:[%s3 + $0x18] sm:$0xff]
          %v311 = vld [vmem:[%s3 + $0x20] sm:$0xff]
          %v312 = vld [vmem:[%s3 + $0x28] sm:$0xff]
          %v313 = vld [vmem:[%s3 + $0x30] sm:$0xff]
          %v314 = vld [vmem:[%s3 + $0x38] sm:$0xff]
          %v315 = vld [vmem:[%s3 + $0x40] sm:$0xff]
          %v316 = vld [vmem:[%s230] sm:$0x1]
          %v318 = vlaneseq
          %v319 = vshrl.u32 %v318, 7
          %v320 = vsub.s32 0, %v319
          %v321 = vrot.slane %v316, %v320
          %v323 = vmul.f32 %v307, %v321
          %v324 = vmul.f32 %v308, %v321
          %v325 = vmul.f32 %v309, %v321
          %v326 = vmul.f32 %v310, %v321
          %v327 = vmul.f32 %v311, %v321
          %v328 = vmul.f32 %v312, %v321
          %v329 = vmul.f32 %v313, %v321
          %v330 = vmul.f32 %v314, %v321
          %v331 = vmul.f32 %v315, %v321
          %v332 = vld [vmem:[%s234] sm:$0xff]
          %334 = vset.pattern.permute.xlu0 0
          %335 = vperm.xlu0 %334, %v332
          %v336 = vpop.permute.xlu0 %335
          %v338 = vmul.f32 %v323, %v336
          %v339 = vmul.f32 %v324, %v336
          %v340 = vmul.f32 %v325, %v336
          %v341 = vmul.f32 %v326, %v336
          %v342 = vmul.f32 %v327, %v336
          %v343 = vmul.f32 %v328, %v336
          %v344 = vmul.f32 %v329, %v336
          %v345 = vmul.f32 %v330, %v336
          %v346 = vmul.f32 %v331, %v336
          %vm347 = vcmask 64512
          %348 = vst.msk [vmem:[#allocation2] sm:$0xff] %vm347, %v338
          %349 = vst.msk [vmem:[#allocation2 + $0x8] sm:$0xff] %vm347, %v339
          %350 = vst.msk [vmem:[#allocation2 + $0x10] sm:$0xff] %vm347, %v340
          %351 = vst.msk [vmem:[#allocation2 + $0x18] sm:$0xff] %vm347, %v341
          %352 = vst.msk [vmem:[#allocation2 + $0x20] sm:$0xff] %vm347, %v342
          %353 = vst.msk [vmem:[#allocation2 + $0x28] sm:$0xff] %vm347, %v343
          %354 = vst.msk [vmem:[#allocation2 + $0x30] sm:$0xff] %vm347, %v344
          %355 = vst.msk [vmem:[#allocation2 + $0x38] sm:$0xff] %vm347, %v345
          %356 = vst.msk [vmem:[#allocation2 + $0x40] sm:$0xff] %vm347, %v346
        $region40: #{tpu_custom_call.1} parent=35 // pred_fallthru
          _
        %s357 = sadd.s32 %s24, 1
        %p358 = scmp.lt.s32.totalorder %s357, 1
        // Predicated region
        $region75: #{tpu_custom_call.1} parent=35 // pred_check
          %p359 = pneg %p358
        $region76: #{tpu_custom_call.1} parent=35 // pred_check_branch
          %361 = sbr.rel (%p359) target = $region78
        $region77: #{tpu_custom_call.1} parent=35 // pred_region
          %s362 = ssub.s32 1, %s251
          %s363 = smul.u32 %s357, 384
          %s364 = sshra.s32 %s363, 7
          %s365 = sand.u32 %s363, 127
          %s366 = smul.u32 %s23, 4
          %s367 = sadd.s32 %s364, %s366
          %s368 = smul.addr %s367, 8
          %s369 = scalar_lea.vmem %s4, %s368
          %s370 = smul.u32 %s362, 4
          %s371 = smul.addr %s370, 8
          %s372 = scalar_lea.vmem [#allocation3], %s371
          %s373 = scalar_lea.sflag [#allocation4], %s362
          %p375 = scmp.lt.u32.totalorder 32, 8
          %p376 = pneg %p375
          // Predicated region
          $region79: #{tpu_custom_call.1} parent=77 // pred_check
            _
          $region80: #{tpu_custom_call.1} parent=77 // pred_check_branch
            %378 = sbr.rel (%p375) target = $region82
          $region81: #{tpu_custom_call.1} parent=77 // pred_region
            %s393 = sand.u32 32, 7
            %p394 = scmp.eq.s32.totalorder %s393, 0
            // Predicated region
            $region94: #{tpu_custom_call.1} parent=81 // pred_check
              %p395 = pneg %p394
            $region95: #{tpu_custom_call.1} parent=81 // pred_check_branch
              %397 = sbr.rel (%p395) target = $region97
            $region96: #{tpu_custom_call.1} parent=81 // pred_region
              loop: start=0, step=1, limit=1
              $region98: #{tpu_custom_call.1} parent=96 // loop_pre_header
                _
              $region99: #{tpu_custom_call.1} parent=96 // loop_header
                %s399 = sphi 0, %s403
                %p400 = scmp.ge.s32.totalorder %s399, 1
                %s404 = sphi %s369, %s369
                %s405 = sphi %s372, %s372
              $region100: #{tpu_custom_call.1} parent=96 // loop_header_branch
                %402 = sbr.rel (%p400) target = $region104
              $region101: #{tpu_custom_call.1} parent=96 // loop_body
                %v406 = vld [vmem:[%s404] sm:$0xff]
                %407 = vst [vmem:[%s405] sm:$0xff] %v406
                %v408 = vld [vmem:[%s404 + $0x8] sm:$0xff]
                %409 = vst [vmem:[%s405 + $0x8] sm:$0xff] %v408
                %v410 = vld [vmem:[%s404 + $0x10] sm:$0xff]
                %411 = vst [vmem:[%s405 + $0x10] sm:$0xff] %v410
                %v412 = vld [vmem:[%s404 + $0x18] sm:$0xff]
                %413 = vst [vmem:[%s405 + $0x18] sm:$0xff] %v412
              $region102: #{tpu_custom_call.1} parent=96 // loop_footer
                %s403 = sadd.s32 1, %s399
              $region103: #{tpu_custom_call.1} parent=96 // loop_footer_branch
                %398 = sbr.rel target = $region99
              $region104: #{tpu_custom_call.1} parent=96 // loop_exit
                _
            $region97: #{tpu_custom_call.1} parent=81 // pred_fallthru
              _
            %p414 = pneg %p394
            // Predicated region
            $region105: #{tpu_custom_call.1} parent=81 // pred_check
              _
            $region106: #{tpu_custom_call.1} parent=81 // pred_check_branch
              %416 = sbr.rel (%p394) target = $region108
            $region107: #{tpu_custom_call.1} parent=81 // pred_region
              %s417 = sand.u32 32, 7
            $region108: #{tpu_custom_call.1} parent=81 // pred_fallthru
              _
          $region82: #{tpu_custom_call.1} parent=77 // pred_fallthru
            _
          // Predicated region
          $region83: #{tpu_custom_call.1} parent=77 // pred_check
            %p379 = pneg %p375
          $region84: #{tpu_custom_call.1} parent=77 // pred_check_branch
            %381 = sbr.rel (%p379) target = $region86
          $region85: #{tpu_custom_call.1} parent=77 // pred_region
            %s382 = sshllo.u32 0, 32
            loop: start=0, step=1, limit=1
            $region87: #{tpu_custom_call.1} parent=85 // loop_pre_header
              _
            $region88: #{tpu_custom_call.1} parent=85 // loop_header
              %s384 = sphi 0, %s388
              %p385 = scmp.ge.s32.totalorder %s384, 1
              %s389 = sphi %s369, %s369
              %s390 = sphi %s372, %s372
            $region89: #{tpu_custom_call.1} parent=85 // loop_header_branch
              %387 = sbr.rel (%p385) target = $region93
            $region90: #{tpu_custom_call.1} parent=85 // loop_body
              %v391 = vld [vmem:[%s389] sm:%s382]
              %392 = vst [vmem:[%s390] sm:%s382] %v391
            $region91: #{tpu_custom_call.1} parent=85 // loop_footer
              %s388 = sadd.s32 1, %s384
            $region92: #{tpu_custom_call.1} parent=85 // loop_footer_branch
              %383 = sbr.rel target = $region88
            $region93: #{tpu_custom_call.1} parent=85 // loop_exit
              _
          $region86: #{tpu_custom_call.1} parent=77 // pred_fallthru
            _
          // Predicated region
          $region109: #{tpu_custom_call.1} parent=77 // pred_check
            _
          $region110: #{tpu_custom_call.1} parent=77 // pred_check_branch
            %420 = sbr.rel (0) target = $region112
          $region111: #{tpu_custom_call.1} parent=77 // pred_region
            %421 = vsyncadd %s373, 512
          $region112: #{tpu_custom_call.1} parent=77 // pred_fallthru
            _
        $region78: #{tpu_custom_call.1} parent=35 // pred_fallthru
          _
        %s422 = smul.u32 %s251, 4
        %s423 = smul.addr %s422, 8
        %s424 = scalar_lea.vmem [#allocation3], %s423
        %s425 = scalar_lea.sflag [#allocation4], %s251
        %s426 = smul.u32 8, 1
        %s427 = smul.u32 %s426, 4
        %s428 = sshll.u32 %s427, 4
        %429 = dma.done %s425, %s428
        %v430 = vld [vmem:[%s424] sm:$0xff]
        %v431 = vld [vmem:[%s424 + $0x8] sm:$0xff]
        %v432 = vld [vmem:[%s424 + $0x10] sm:$0xff]
        %v433 = vld [vmem:[%s424 + $0x18] sm:$0xff]
        %v434 = vld [vmem:[#allocation2] sm:$0xff]
        %s435 = scalar_lea.vmem [#allocation2], 8
        %v436 = vld [vmem:[%s435] sm:$0xff]
        %441 = vrot.lane.b32.xlu0 %v430, 127
        %v442 = vpop.permute.xlu0 %441
        %443 = vrot.lane.b32.xlu0 %v431, 127
        %v444 = vpop.permute.xlu0 %443
        %445 = vrot.lane.b32.xlu0 %v432, 127
        %v446 = vpop.permute.xlu0 %445
        %447 = vrot.lane.b32.xlu0 %v433, 127
        %v448 = vpop.permute.xlu0 %447
        %vm449 = vcmask 1039360
        %v450 = vsel %vm449, %v442, %v444
        %v451 = vsel %vm449, %v444, %v446
        %v452 = vsel %vm449, %v446, %v448
        %vm456 = vcmask 64512
        %v458 = vsel %vm456, %v436, 0
        %460 = vmatprep.subr.mxu0 %v451
        %461 = vmatpush1.msra.mxu0 %v450
        %462 = vmatprep.subr.mxu0 0.0
        %463 = vmatpush1.msra.mxu0 0.0
        %464 = vmatprep.subr.mxu0 0.0
        %465 = vmatpush1.msra.mxu0 0.0
        %466 = vmatprep.subr.mxu0 0.0
        %467 = vmatpush1.msra.mxu0 0.0
        %468 = vmatprep.subr.mxu0 0.0
        %469 = vmatpush1.msra.mxu0 0.0
        %470 = vmatprep.subr.mxu0 0.0
        %471 = vmatpush1.msra.mxu0 0.0
        %472 = vmatprep.subr.mxu0 0.0
        %473 = vmatpush1.msra.mxu0 0.0
        %474 = vmatprep.subr.mxu0 0.0
        %475 = vmatpush1.msra.mxu0 0.0
        %476 = vmatprep.subr.mxu0 0.0
        %477 = vmatpush1.msra.mxu0 0.0
        %478 = vmatprep.subr.mxu0 0.0
        %479 = vmatpush1.msra.mxu0 0.0
        %480 = vmatprep.subr.mxu0 0.0
        %481 = vmatpush1.msra.mxu0 0.0
        %482 = vmatprep.subr.mxu0 0.0
        %483 = vmatpush1.msra.mxu0 0.0
        %484 = vmatprep.subr.mxu0 0.0
        %485 = vmatpush1.msra.mxu0 0.0
        %486 = vmatprep.subr.mxu0 0.0
        %487 = vmatpush1.msra.mxu0 0.0
        %488 = vmatprep.subr.mxu0 0.0
        %489 = vmatpush1.msra.mxu0 0.0
        %490 = vmatprep.subr.mxu0 0.0
        %491 = vmatpush1.msra.mxu0 0.0
        %492 = vmatprep.subr.mxu0 0.0
        %493 = vmatpush1.msra.mxu0 0.0
        %494 = vmatprep.subr.mxu0 0.0
        %495 = vmatpush1.msra.mxu0 0.0
        %496 = vmatprep.subr.mxu0 0.0
        %497 = vmatpush1.msra.mxu0 0.0
        %498 = vmatprep.subr.mxu0 0.0
        %499 = vmatpush1.msra.mxu0 0.0
        %500 = vmatprep.subr.mxu0 0.0
        %501 = vmatpush1.msra.mxu0 0.0
        %502 = vmatprep.subr.mxu0 0.0
        %503 = vmatpush1.msra.mxu0 0.0
        %504 = vmatprep.subr.mxu0 0.0
        %505 = vmatpush1.msra.mxu0 0.0
        %506 = vmatprep.subr.mxu0 0.0
        %507 = vmatpush1.msra.mxu0 0.0
        %508 = vmatprep.subr.mxu0 0.0
        %509 = vmatpush1.msra.mxu0 0.0
        %510 = vmatprep.subr.mxu0 0.0
        %511 = vmatpush1.msra.mxu0 0.0
        %512 = vmatprep.subr.mxu0 0.0
        %513 = vmatpush1.msra.mxu0 0.0
        %514 = vmatprep.subr.mxu0 0.0
        %515 = vmatpush1.msra.mxu0 0.0
        %516 = vmatprep.subr.mxu0 0.0
        %517 = vmatpush1.msra.mxu0 0.0
        %518 = vmatprep.subr.mxu0 0.0
        %519 = vmatpush1.msra.mxu0 0.0
        %520 = vmatprep.subr.mxu0 0.0
        %521 = vmatpush1.msra.mxu0 0.0
        %522 = vmatprep.subr.mxu0 0.0
        %523 = vmatpush1.msra.mxu0 0.0
        %524 = vmatprep.mubr.f32.mxu0 0.0
        %525 = vmatmul.mubr.f32.gmra.mrb[0].mxu0 %v458
        %v526 = vpop.f32.mrb[0].mxu0
        %v527 = vadd.f32 0.0, %v526
        %v528 = vpop.f32.mrb[0].mxu0
        %v529 = vadd.f32 0.0, %v528
        %530 = vdwg.mxu0
        %531 = vmatprep.subr.mxu0 0.0
        %532 = vmatpush1.msra.mxu0 %v452
        %533 = vmatprep.subr.mxu0 0.0
        %534 = vmatpush1.msra.mxu0 0.0
        %535 = vmatprep.subr.mxu0 0.0
        %536 = vmatpush1.msra.mxu0 0.0
        %537 = vmatprep.subr.mxu0 0.0
        %538 = vmatpush1.msra.mxu0 0.0
        %539 = vmatprep.subr.mxu0 0.0
        %540 = vmatpush1.msra.mxu0 0.0
        %541 = vmatprep.subr.mxu0 0.0
        %542 = vmatpush1.msra.mxu0 0.0
        %543 = vmatprep.subr.mxu0 0.0
        %544 = vmatpush1.msra.mxu0 0.0
        %545 = vmatprep.subr.mxu0 0.0
        %546 = vmatpush1.msra.mxu0 0.0
        %547 = vmatprep.subr.mxu0 0.0
        %548 = vmatpush1.msra.mxu0 0.0
        %549 = vmatprep.subr.mxu0 0.0
        %550 = vmatpush1.msra.mxu0 0.0
        %551 = vmatprep.subr.mxu0 0.0
        %552 = vmatpush1.msra.mxu0 0.0
        %553 = vmatprep.subr.mxu0 0.0
        %554 = vmatpush1.msra.mxu0 0.0
        %555 = vmatprep.subr.mxu0 0.0
        %556 = vmatpush1.msra.mxu0 0.0
        %557 = vmatprep.subr.mxu0 0.0
        %558 = vmatpush1.msra.mxu0 0.0
        %559 = vmatprep.subr.mxu0 0.0
        %560 = vmatpush1.msra.mxu0 0.0
        %561 = vmatprep.subr.mxu0 0.0
        %562 = vmatpush1.msra.mxu0 0.0
        %563 = vmatprep.subr.mxu0 0.0
        %564 = vmatpush1.msra.mxu0 0.0
        %565 = vmatprep.subr.mxu0 0.0
        %566 = vmatpush1.msra.mxu0 0.0
        %567 = vmatprep.subr.mxu0 0.0
        %568 = vmatpush1.msra.mxu0 0.0
        %569 = vmatprep.subr.mxu0 0.0
        %570 = vmatpush1.msra.mxu0 0.0
        %571 = vmatprep.subr.mxu0 0.0
        %572 = vmatpush1.msra.mxu0 0.0
        %573 = vmatprep.subr.mxu0 0.0
        %574 = vmatpush1.msra.mxu0 0.0
        %575 = vmatprep.subr.mxu0 0.0
        %576 = vmatpush1.msra.mxu0 0.0
        %577 = vmatprep.subr.mxu0 0.0
        %578 = vmatpush1.msra.mxu0 0.0
        %579 = vmatprep.subr.mxu0 0.0
        %580 = vmatpush1.msra.mxu0 0.0
        %581 = vmatprep.subr.mxu0 0.0
        %582 = vmatpush1.msra.mxu0 0.0
        %583 = vmatprep.subr.mxu0 0.0
        %584 = vmatpush1.msra.mxu0 0.0
        %585 = vmatprep.subr.mxu0 0.0
        %586 = vmatpush1.msra.mxu0 0.0
        %587 = vmatprep.subr.mxu0 0.0
        %588 = vmatpush1.msra.mxu0 0.0
        %589 = vmatprep.subr.mxu0 0.0
        %590 = vmatpush1.msra.mxu0 0.0
        %591 = vmatprep.subr.mxu0 0.0
        %592 = vmatpush1.msra.mxu0 0.0
        %593 = vmatprep.subr.mxu0 0.0
        %594 = vmatpush1.msra.mxu0 0.0
        %595 = vmatprep.mubr.f32.mxu0 0.0
        %596 = vmatmul.mubr.f32.gmra.mrb[0].mxu0 %v458
        %v597 = vpop.f32.mrb[0].mxu0
        %v598 = vadd.f32 0.0, %v597
        %v599 = vpop.f32.mrb[0].mxu0
        %600 = vdwg.mxu0
        %v602 = vsel %vm456, %v434, 0
        %604 = vmatprep.subr.mxu0 %v431
        %605 = vmatpush1.msra.mxu0 %v430
        %606 = vmatprep.subr.mxu0 0.0
        %607 = vmatpush1.msra.mxu0 0.0
        %608 = vmatprep.subr.mxu0 0.0
        %609 = vmatpush1.msra.mxu0 0.0
        %610 = vmatprep.subr.mxu0 0.0
        %611 = vmatpush1.msra.mxu0 0.0
        %612 = vmatprep.subr.mxu0 0.0
        %613 = vmatpush1.msra.mxu0 0.0
        %614 = vmatprep.subr.mxu0 0.0
        %615 = vmatpush1.msra.mxu0 0.0
        %616 = vmatprep.subr.mxu0 0.0
        %617 = vmatpush1.msra.mxu0 0.0
        %618 = vmatprep.subr.mxu0 0.0
        %619 = vmatpush1.msra.mxu0 0.0
        %620 = vmatprep.subr.mxu0 0.0
        %621 = vmatpush1.msra.mxu0 0.0
        %622 = vmatprep.subr.mxu0 0.0
        %623 = vmatpush1.msra.mxu0 0.0
        %624 = vmatprep.subr.mxu0 0.0
        %625 = vmatpush1.msra.mxu0 0.0
        %626 = vmatprep.subr.mxu0 0.0
        %627 = vmatpush1.msra.mxu0 0.0
        %628 = vmatprep.subr.mxu0 0.0
        %629 = vmatpush1.msra.mxu0 0.0
        %630 = vmatprep.subr.mxu0 0.0
        %631 = vmatpush1.msra.mxu0 0.0
        %632 = vmatprep.subr.mxu0 0.0
        %633 = vmatpush1.msra.mxu0 0.0
        %634 = vmatprep.subr.mxu0 0.0
        %635 = vmatpush1.msra.mxu0 0.0
        %636 = vmatprep.subr.mxu0 0.0
        %637 = vmatpush1.msra.mxu0 0.0
        %638 = vmatprep.subr.mxu0 0.0
        %639 = vmatpush1.msra.mxu0 0.0
        %640 = vmatprep.subr.mxu0 0.0
        %641 = vmatpush1.msra.mxu0 0.0
        %642 = vmatprep.subr.mxu0 0.0
        %643 = vmatpush1.msra.mxu0 0.0
        %644 = vmatprep.subr.mxu0 0.0
        %645 = vmatpush1.msra.mxu0 0.0
        %646 = vmatprep.subr.mxu0 0.0
        %647 = vmatpush1.msra.mxu0 0.0
        %648 = vmatprep.subr.mxu0 0.0
        %649 = vmatpush1.msra.mxu0 0.0
        %650 = vmatprep.subr.mxu0 0.0
        %651 = vmatpush1.msra.mxu0 0.0
        %652 = vmatprep.subr.mxu0 0.0
        %653 = vmatpush1.msra.mxu0 0.0
        %654 = vmatprep.subr.mxu0 0.0
        %655 = vmatpush1.msra.mxu0 0.0
        %656 = vmatprep.subr.mxu0 0.0
        %657 = vmatpush1.msra.mxu0 0.0
        %658 = vmatprep.subr.mxu0 0.0
        %659 = vmatpush1.msra.mxu0 0.0
        %660 = vmatprep.subr.mxu0 0.0
        %661 = vmatpush1.msra.mxu0 0.0
        %662 = vmatprep.subr.mxu0 0.0
        %663 = vmatpush1.msra.mxu0 0.0
        %664 = vmatprep.subr.mxu0 0.0
        %665 = vmatpush1.msra.mxu0 0.0
        %666 = vmatprep.subr.mxu0 0.0
        %667 = vmatpush1.msra.mxu0 0.0
        %668 = vmatprep.mubr.f32.mxu0 0.0
        %669 = vmatmul.mubr.f32.gmra.mrb[0].mxu0 %v602
        %v670 = vpop.f32.mrb[0].mxu0
        %v671 = vadd.f32 %v527, %v670
        %v672 = vpop.f32.mrb[0].mxu0
        %v673 = vadd.f32 %v529, %v672
        %674 = vdwg.mxu0
        %675 = vmatprep.subr.mxu0 0.0
        %676 = vmatpush1.msra.mxu0 %v432
        %677 = vmatprep.subr.mxu0 0.0
        %678 = vmatpush1.msra.mxu0 0.0
        %679 = vmatprep.subr.mxu0 0.0
        %680 = vmatpush1.msra.mxu0 0.0
        %681 = vmatprep.subr.mxu0 0.0
        %682 = vmatpush1.msra.mxu0 0.0
        %683 = vmatprep.subr.mxu0 0.0
        %684 = vmatpush1.msra.mxu0 0.0
        %685 = vmatprep.subr.mxu0 0.0
        %686 = vmatpush1.msra.mxu0 0.0
        %687 = vmatprep.subr.mxu0 0.0
        %688 = vmatpush1.msra.mxu0 0.0
        %689 = vmatprep.subr.mxu0 0.0
        %690 = vmatpush1.msra.mxu0 0.0
        %691 = vmatprep.subr.mxu0 0.0
        %692 = vmatpush1.msra.mxu0 0.0
        %693 = vmatprep.subr.mxu0 0.0
        %694 = vmatpush1.msra.mxu0 0.0
        %695 = vmatprep.subr.mxu0 0.0
        %696 = vmatpush1.msra.mxu0 0.0
        %697 = vmatprep.subr.mxu0 0.0
        %698 = vmatpush1.msra.mxu0 0.0
        %699 = vmatprep.subr.mxu0 0.0
        %700 = vmatpush1.msra.mxu0 0.0
        %701 = vmatprep.subr.mxu0 0.0
        %702 = vmatpush1.msra.mxu0 0.0
        %703 = vmatprep.subr.mxu0 0.0
        %704 = vmatpush1.msra.mxu0 0.0
        %705 = vmatprep.subr.mxu0 0.0
        %706 = vmatpush1.msra.mxu0 0.0
        %707 = vmatprep.subr.mxu0 0.0
        %708 = vmatpush1.msra.mxu0 0.0
        %709 = vmatprep.subr.mxu0 0.0
        %710 = vmatpush1.msra.mxu0 0.0
        %711 = vmatprep.subr.mxu0 0.0
        %712 = vmatpush1.msra.mxu0 0.0
        %713 = vmatprep.subr.mxu0 0.0
        %714 = vmatpush1.msra.mxu0 0.0
        %715 = vmatprep.subr.mxu0 0.0
        %716 = vmatpush1.msra.mxu0 0.0
        %717 = vmatprep.subr.mxu0 0.0
        %718 = vmatpush1.msra.mxu0 0.0
        %719 = vmatprep.subr.mxu0 0.0
        %720 = vmatpush1.msra.mxu0 0.0
        %721 = vmatprep.subr.mxu0 0.0
        %722 = vmatpush1.msra.mxu0 0.0
        %723 = vmatprep.subr.mxu0 0.0
        %724 = vmatpush1.msra.mxu0 0.0
        %725 = vmatprep.subr.mxu0 0.0
        %726 = vmatpush1.msra.mxu0 0.0
        %727 = vmatprep.subr.mxu0 0.0
        %728 = vmatpush1.msra.mxu0 0.0
        %729 = vmatprep.subr.mxu0 0.0
        %730 = vmatpush1.msra.mxu0 0.0
        %731 = vmatprep.subr.mxu0 0.0
        %732 = vmatpush1.msra.mxu0 0.0
        %733 = vmatprep.subr.mxu0 0.0
        %734 = vmatpush1.msra.mxu0 0.0
        %735 = vmatprep.subr.mxu0 0.0
        %736 = vmatpush1.msra.mxu0 0.0
        %737 = vmatprep.subr.mxu0 0.0
        %738 = vmatpush1.msra.mxu0 0.0
        %739 = vmatprep.mubr.f32.mxu0 0.0
        %740 = vmatmul.mubr.f32.gmra.mrb[0].mxu0 %v602
        %v741 = vpop.f32.mrb[0].mxu0
        %v742 = vadd.f32 %v598, %v741
        %v743 = vpop.f32.mrb[0].mxu0
        %744 = vdwg.mxu0
        %s745 = scalar_lea.vmem [#allocation2], 16
        %v746 = vld [vmem:[%s745] sm:$0xff]
        %747 = vrot.lane.b32.xlu0 %v430, 126
        %v748 = vpop.permute.xlu0 %747
        %749 = vrot.lane.b32.xlu0 %v431, 126
        %v750 = vpop.permute.xlu0 %749
        %751 = vrot.lane.b32.xlu0 %v432, 126
        %v752 = vpop.permute.xlu0 %751
        %753 = vrot.lane.b32.xlu0 %v433, 126
        %v754 = vpop.permute.xlu0 %753
        %vm755 = vcmask 1031168
        %v756 = vsel %vm755, %v748, %v750
        %v757 = vsel %vm755, %v750, %v752
        %v758 = vsel %vm755, %v752, %v754
        %v763 = vsel %vm456, %v746, 0
        %765 = vmatprep.subr.mxu0 %v757
        %766 = vmatpush1.msra.mxu0 %v756
        %767 = vmatprep.subr.mxu0 0.0
        %768 = vmatpush1.msra.mxu0 0.0
        %769 = vmatprep.subr.mxu0 0.0
        %770 = vmatpush1.msra.mxu0 0.0
        %771 = vmatprep.subr.mxu0 0.0
        %772 = vmatpush1.msra.mxu0 0.0
        %773 = vmatprep.subr.mxu0 0.0
        %774 = vmatpush1.msra.mxu0 0.0
        %775 = vmatprep.subr.mxu0 0.0
        %776 = vmatpush1.msra.mxu0 0.0
        %777 = vmatprep.subr.mxu0 0.0
        %778 = vmatpush1.msra.mxu0 0.0
        %779 = vmatprep.subr.mxu0 0.0
        %780 = vmatpush1.msra.mxu0 0.0
        %781 = vmatprep.subr.mxu0 0.0
        %782 = vmatpush1.msra.mxu0 0.0
        %783 = vmatprep.subr.mxu0 0.0
        %784 = vmatpush1.msra.mxu0 0.0
        %785 = vmatprep.subr.mxu0 0.0
        %786 = vmatpush1.msra.mxu0 0.0
        %787 = vmatprep.subr.mxu0 0.0
        %788 = vmatpush1.msra.mxu0 0.0
        %789 = vmatprep.subr.mxu0 0.0
        %790 = vmatpush1.msra.mxu0 0.0
        %791 = vmatprep.subr.mxu0 0.0
        %792 = vmatpush1.msra.mxu0 0.0
        %793 = vmatprep.subr.mxu0 0.0
        %794 = vmatpush1.msra.mxu0 0.0
        %795 = vmatprep.subr.mxu0 0.0
        %796 = vmatpush1.msra.mxu0 0.0
        %797 = vmatprep.subr.mxu0 0.0
        %798 = vmatpush1.msra.mxu0 0.0
        %799 = vmatprep.subr.mxu0 0.0
        %800 = vmatpush1.msra.mxu0 0.0
        %801 = vmatprep.subr.mxu0 0.0
        %802 = vmatpush1.msra.mxu0 0.0
        %803 = vmatprep.subr.mxu0 0.0
        %804 = vmatpush1.msra.mxu0 0.0
        %805 = vmatprep.subr.mxu0 0.0
        %806 = vmatpush1.msra.mxu0 0.0
        %807 = vmatprep.subr.mxu0 0.0
        %808 = vmatpush1.msra.mxu0 0.0
        %809 = vmatprep.subr.mxu0 0.0
        %810 = vmatpush1.msra.mxu0 0.0
        %811 = vmatprep.subr.mxu0 0.0
        %812 = vmatpush1.msra.mxu0 0.0
        %813 = vmatprep.subr.mxu0 0.0
        %814 = vmatpush1.msra.mxu0 0.0
        %815 = vmatprep.subr.mxu0 0.0
        %816 = vmatpush1.msra.mxu0 0.0
        %817 = vmatprep.subr.mxu0 0.0
        %818 = vmatpush1.msra.mxu0 0.0
        %819 = vmatprep.subr.mxu0 0.0
        %820 = vmatpush1.msra.mxu0 0.0
        %821 = vmatprep.subr.mxu0 0.0
        %822 = vmatpush1.msra.mxu0 0.0
        %823 = vmatprep.subr.mxu0 0.0
        %824 = vmatpush1.msra.mxu0 0.0
        %825 = vmatprep.subr.mxu0 0.0
        %826 = vmatpush1.msra.mxu0 0.0
        %827 = vmatprep.subr.mxu0 0.0
        %828 = vmatpush1.msra.mxu0 0.0
        %829 = vmatprep.mubr.f32.mxu0 0.0
        %830 = vmatmul.mubr.f32.gmra.mrb[0].mxu0 %v763
        %v831 = vpop.f32.mrb[0].mxu0
        %v832 = vadd.f32 0.0, %v831
        %v833 = vpop.f32.mrb[0].mxu0
        %v834 = vadd.f32 0.0, %v833
        %835 = vdwg.mxu0
        %836 = vmatprep.subr.mxu0 0.0
        %837 = vmatpush1.msra.mxu0 %v758
        %838 = vmatprep.subr.mxu0 0.0
        %839 = vmatpush1.msra.mxu0 0.0
        %840 = vmatprep.subr.mxu0 0.0
        %841 = vmatpush1.msra.mxu0 0.0
        %842 = vmatprep.subr.mxu0 0.0
        %843 = vmatpush1.msra.mxu0 0.0
        %844 = vmatprep.subr.mxu0 0.0
        %845 = vmatpush1.msra.mxu0 0.0
        %846 = vmatprep.subr.mxu0 0.0
        %847 = vmatpush1.msra.mxu0 0.0
        %848 = vmatprep.subr.mxu0 0.0
        %849 = vmatpush1.msra.mxu0 0.0
        %850 = vmatprep.subr.mxu0 0.0
        %851 = vmatpush1.msra.mxu0 0.0
        %852 = vmatprep.subr.mxu0 0.0
        %853 = vmatpush1.msra.mxu0 0.0
        %854 = vmatprep.subr.mxu0 0.0
        %855 = vmatpush1.msra.mxu0 0.0
        %856 = vmatprep.subr.mxu0 0.0
        %857 = vmatpush1.msra.mxu0 0.0
        %858 = vmatprep.subr.mxu0 0.0
        %859 = vmatpush1.msra.mxu0 0.0
        %860 = vmatprep.subr.mxu0 0.0
        %861 = vmatpush1.msra.mxu0 0.0
        %862 = vmatprep.subr.mxu0 0.0
        %863 = vmatpush1.msra.mxu0 0.0
        %864 = vmatprep.subr.mxu0 0.0
        %865 = vmatpush1.msra.mxu0 0.0
        %866 = vmatprep.subr.mxu0 0.0
        %867 = vmatpush1.msra.mxu0 0.0
        %868 = vmatprep.subr.mxu0 0.0
        %869 = vmatpush1.msra.mxu0 0.0
        %870 = vmatprep.subr.mxu0 0.0
        %871 = vmatpush1.msra.mxu0 0.0
        %872 = vmatprep.subr.mxu0 0.0
        %873 = vmatpush1.msra.mxu0 0.0
        %874 = vmatprep.subr.mxu0 0.0
        %875 = vmatpush1.msra.mxu0 0.0
        %876 = vmatprep.subr.mxu0 0.0
        %877 = vmatpush1.msra.mxu0 0.0
        %878 = vmatprep.subr.mxu0 0.0
        %879 = vmatpush1.msra.mxu0 0.0
        %880 = vmatprep.subr.mxu0 0.0
        %881 = vmatpush1.msra.mxu0 0.0
        %882 = vmatprep.subr.mxu0 0.0
        %883 = vmatpush1.msra.mxu0 0.0
        %884 = vmatprep.subr.mxu0 0.0
        %885 = vmatpush1.msra.mxu0 0.0
        %886 = vmatprep.subr.mxu0 0.0
        %887 = vmatpush1.msra.mxu0 0.0
        %888 = vmatprep.subr.mxu0 0.0
        %889 = vmatpush1.msra.mxu0 0.0
        %890 = vmatprep.subr.mxu0 0.0
        %891 = vmatpush1.msra.mxu0 0.0
        %892 = vmatprep.subr.mxu0 0.0
        %893 = vmatpush1.msra.mxu0 0.0
        %894 = vmatprep.subr.mxu0 0.0
        %895 = vmatpush1.msra.mxu0 0.0
        %896 = vmatprep.subr.mxu0 0.0
        %897 = vmatpush1.msra.mxu0 0.0
        %898 = vmatprep.subr.mxu0 0.0
        %899 = vmatpush1.msra.mxu0 0.0
        %900 = vmatprep.mubr.f32.mxu0 0.0
        %901 = vmatmul.mubr.f32.gmra.mrb[0].mxu0 %v763
        %v902 = vpop.f32.mrb[0].mxu0
        %v903 = vadd.f32 0.0, %v902
        %v904 = vpop.f32.mrb[0].mxu0
        %905 = vdwg.mxu0
        %v906 = vadd.f32 %v671, %v832
        %v907 = vadd.f32 %v673, %v834
        %v908 = vadd.f32 %v742, %v903
        %s909 = scalar_lea.vmem [#allocation2], 24
        %v910 = vld [vmem:[%s909] sm:$0xff]
        %911 = vrot.lane.b32.xlu0 %v430, 110
        %v912 = vpop.permute.xlu0 %911
        %913 = vrot.lane.b32.xlu0 %v431, 110
        %v914 = vpop.permute.xlu0 %913
        %915 = vrot.lane.b32.xlu0 %v432, 110
        %v916 = vpop.permute.xlu0 %915
        %917 = vrot.lane.b32.xlu0 %v433, 110
        %v918 = vpop.permute.xlu0 %917
        %vm919 = vcmask 900096
        %v920 = vsel %vm919, %v912, %v914
        %v921 = vsel %vm919, %v914, %v916
        %v922 = vsel %vm919, %v916, %v918
        %v927 = vsel %vm456, %v910, 0
        %929 = vmatprep.subr.mxu0 %v921
        %930 = vmatpush1.msra.mxu0 %v920
        %931 = vmatprep.subr.mxu0 0.0
        %932 = vmatpush1.msra.mxu0 0.0
        %933 = vmatprep.subr.mxu0 0.0
        %934 = vmatpush1.msra.mxu0 0.0
        %935 = vmatprep.subr.mxu0 0.0
        %936 = vmatpush1.msra.mxu0 0.0
        %937 = vmatprep.subr.mxu0 0.0
        %938 = vmatpush1.msra.mxu0 0.0
        %939 = vmatprep.subr.mxu0 0.0
        %940 = vmatpush1.msra.mxu0 0.0
        %941 = vmatprep.subr.mxu0 0.0
        %942 = vmatpush1.msra.mxu0 0.0
        %943 = vmatprep.subr.mxu0 0.0
        %944 = vmatpush1.msra.mxu0 0.0
        %945 = vmatprep.subr.mxu0 0.0
        %946 = vmatpush1.msra.mxu0 0.0
        %947 = vmatprep.subr.mxu0 0.0
        %948 = vmatpush1.msra.mxu0 0.0
        %949 = vmatprep.subr.mxu0 0.0
        %950 = vmatpush1.msra.mxu0 0.0
        %951 = vmatprep.subr.mxu0 0.0
        %952 = vmatpush1.msra.mxu0 0.0
        %953 = vmatprep.subr.mxu0 0.0
        %954 = vmatpush1.msra.mxu0 0.0
        %955 = vmatprep.subr.mxu0 0.0
        %956 = vmatpush1.msra.mxu0 0.0
        %957 = vmatprep.subr.mxu0 0.0
        %958 = vmatpush1.msra.mxu0 0.0
        %959 = vmatprep.subr.mxu0 0.0
        %960 = vmatpush1.msra.mxu0 0.0
        %961 = vmatprep.subr.mxu0 0.0
        %962 = vmatpush1.msra.mxu0 0.0
        %963 = vmatprep.subr.mxu0 0.0
        %964 = vmatpush1.msra.mxu0 0.0
        %965 = vmatprep.subr.mxu0 0.0
        %966 = vmatpush1.msra.mxu0 0.0
        %967 = vmatprep.subr.mxu0 0.0
        %968 = vmatpush1.msra.mxu0 0.0
        %969 = vmatprep.subr.mxu0 0.0
        %970 = vmatpush1.msra.mxu0 0.0
        %971 = vmatprep.subr.mxu0 0.0
        %972 = vmatpush1.msra.mxu0 0.0
        %973 = vmatprep.subr.mxu0 0.0
        %974 = vmatpush1.msra.mxu0 0.0
        %975 = vmatprep.subr.mxu0 0.0
        %976 = vmatpush1.msra.mxu0 0.0
        %977 = vmatprep.subr.mxu0 0.0
        %978 = vmatpush1.msra.mxu0 0.0
        %979 = vmatprep.subr.mxu0 0.0
        %980 = vmatpush1.msra.mxu0 0.0
        %981 = vmatprep.subr.mxu0 0.0
        %982 = vmatpush1.msra.mxu0 0.0
        %983 = vmatprep.subr.mxu0 0.0
        %984 = vmatpush1.msra.mxu0 0.0
        %985 = vmatprep.subr.mxu0 0.0
        %986 = vmatpush1.msra.mxu0 0.0
        %987 = vmatprep.subr.mxu0 0.0
        %988 = vmatpush1.msra.mxu0 0.0
        %989 = vmatprep.subr.mxu0 0.0
        %990 = vmatpush1.msra.mxu0 0.0
        %991 = vmatprep.subr.mxu0 0.0
        %992 = vmatpush1.msra.mxu0 0.0
        %993 = vmatprep.mubr.f32.mxu0 0.0
        %994 = vmatmul.mubr.f32.gmra.mrb[0].mxu0 %v927
        %v995 = vpop.f32.mrb[0].mxu0
        %v996 = vadd.f32 0.0, %v995
        %v997 = vpop.f32.mrb[0].mxu0
        %v998 = vadd.f32 0.0, %v997
        %999 = vdwg.mxu0
        %1000 = vmatprep.subr.mxu0 0.0
        %1001 = vmatpush1.msra.mxu0 %v922
        %1002 = vmatprep.subr.mxu0 0.0
        %1003 = vmatpush1.msra.mxu0 0.0
        %1004 = vmatprep.subr.mxu0 0.0
        %1005 = vmatpush1.msra.mxu0 0.0
        %1006 = vmatprep.subr.mxu0 0.0
        %1007 = vmatpush1.msra.mxu0 0.0
        %1008 = vmatprep.subr.mxu0 0.0
        %1009 = vmatpush1.msra.mxu0 0.0
        %1010 = vmatprep.subr.mxu0 0.0
        %1011 = vmatpush1.msra.mxu0 0.0
        %1012 = vmatprep.subr.mxu0 0.0
        %1013 = vmatpush1.msra.mxu0 0.0
        %1014 = vmatprep.subr.mxu0 0.0
        %1015 = vmatpush1.msra.mxu0 0.0
        %1016 = vmatprep.subr.mxu0 0.0
        %1017 = vmatpush1.msra.mxu0 0.0
        %1018 = vmatprep.subr.mxu0 0.0
        %1019 = vmatpush1.msra.mxu0 0.0
        %1020 = vmatprep.subr.mxu0 0.0
        %1021 = vmatpush1.msra.mxu0 0.0
        %1022 = vmatprep.subr.mxu0 0.0
        %1023 = vmatpush1.msra.mxu0 0.0
        %1024 = vmatprep.subr.mxu0 0.0
        %1025 = vmatpush1.msra.mxu0 0.0
        %1026 = vmatprep.subr.mxu0 0.0
        %1027 = vmatpush1.msra.mxu0 0.0
        %1028 = vmatprep.subr.mxu0 0.0
        %1029 = vmatpush1.msra.mxu0 0.0
        %1030 = vmatprep.subr.mxu0 0.0
        %1031 = vmatpush1.msra.mxu0 0.0
        %1032 = vmatprep.subr.mxu0 0.0
        %1033 = vmatpush1.msra.mxu0 0.0
        %1034 = vmatprep.subr.mxu0 0.0
        %1035 = vmatpush1.msra.mxu0 0.0
        %1036 = vmatprep.subr.mxu0 0.0
        %1037 = vmatpush1.msra.mxu0 0.0
        %1038 = vmatprep.subr.mxu0 0.0
        %1039 = vmatpush1.msra.mxu0 0.0
        %1040 = vmatprep.subr.mxu0 0.0
        %1041 = vmatpush1.msra.mxu0 0.0
        %1042 = vmatprep.subr.mxu0 0.0
        %1043 = vmatpush1.msra.mxu0 0.0
        %1044 = vmatprep.subr.mxu0 0.0
        %1045 = vmatpush1.msra.mxu0 0.0
        %1046 = vmatprep.subr.mxu0 0.0
        %1047 = vmatpush1.msra.mxu0 0.0
        %1048 = vmatprep.subr.mxu0 0.0
        %1049 = vmatpush1.msra.mxu0 0.0
        %1050 = vmatprep.subr.mxu0 0.0
        %1051 = vmatpush1.msra.mxu0 0.0
        %1052 = vmatprep.subr.mxu0 0.0
        %1053 = vmatpush1.msra.mxu0 0.0
        %1054 = vmatprep.subr.mxu0 0.0
        %1055 = vmatpush1.msra.mxu0 0.0
        %1056 = vmatprep.subr.mxu0 0.0
        %1057 = vmatpush1.msra.mxu0 0.0
        %1058 = vmatprep.subr.mxu0 0.0
        %1059 = vmatpush1.msra.mxu0 0.0
        %1060 = vmatprep.subr.mxu0 0.0
        %1061 = vmatpush1.msra.mxu0 0.0
        %1062 = vmatprep.subr.mxu0 0.0
        %1063 = vmatpush1.msra.mxu0 0.0
        %1064 = vmatprep.mubr.f32.mxu0 0.0
        %1065 = vmatmul.mubr.f32.gmra.mrb[0].mxu0 %v927
        %v1066 = vpop.f32.mrb[0].mxu0
        %v1067 = vadd.f32 0.0, %v1066
        %v1068 = vpop.f32.mrb[0].mxu0
        %1069 = vdwg.mxu0
        %v1070 = vadd.f32 %v906, %v996
        %v1071 = vadd.f32 %v907, %v998
        %v1072 = vadd.f32 %v908, %v1067
        %s1073 = scalar_lea.vmem [#allocation2], 32
        %v1074 = vld [vmem:[%s1073] sm:$0xff]
        %1075 = vrot.lane.b32.xlu0 %v430, 109
        %v1076 = vpop.permute.xlu0 %1075
        %1077 = vrot.lane.b32.xlu0 %v431, 109
        %v1078 = vpop.permute.xlu0 %1077
        %1079 = vrot.lane.b32.xlu0 %v432, 109
        %v1080 = vpop.permute.xlu0 %1079
        %1081 = vrot.lane.b32.xlu0 %v433, 109
        %v1082 = vpop.permute.xlu0 %1081
        %vm1083 = vcmask 891904
        %v1084 = vsel %vm1083, %v1076, %v1078
        %v1085 = vsel %vm1083, %v1078, %v1080
        %v1086 = vsel %vm1083, %v1080, %v1082
        %v1091 = vsel %vm456, %v1074, 0
        %1093 = vmatprep.subr.mxu0 %v1085
        %1094 = vmatpush1.msra.mxu0 %v1084
        %1095 = vmatprep.subr.mxu0 0.0
        %1096 = vmatpush1.msra.mxu0 0.0
        %1097 = vmatprep.subr.mxu0 0.0
        %1098 = vmatpush1.msra.mxu0 0.0
        %1099 = vmatprep.subr.mxu0 0.0
        %1100 = vmatpush1.msra.mxu0 0.0
        %1101 = vmatprep.subr.mxu0 0.0
        %1102 = vmatpush1.msra.mxu0 0.0
        %1103 = vmatprep.subr.mxu0 0.0
        %1104 = vmatpush1.msra.mxu0 0.0
        %1105 = vmatprep.subr.mxu0 0.0
        %1106 = vmatpush1.msra.mxu0 0.0
        %1107 = vmatprep.subr.mxu0 0.0
        %1108 = vmatpush1.msra.mxu0 0.0
        %1109 = vmatprep.subr.mxu0 0.0
        %1110 = vmatpush1.msra.mxu0 0.0
        %1111 = vmatprep.subr.mxu0 0.0
        %1112 = vmatpush1.msra.mxu0 0.0
        %1113 = vmatprep.subr.mxu0 0.0
        %1114 = vmatpush1.msra.mxu0 0.0
        %1115 = vmatprep.subr.mxu0 0.0
        %1116 = vmatpush1.msra.mxu0 0.0
        %1117 = vmatprep.subr.mxu0 0.0
        %1118 = vmatpush1.msra.mxu0 0.0
        %1119 = vmatprep.subr.mxu0 0.0
        %1120 = vmatpush1.msra.mxu0 0.0
        %1121 = vmatprep.subr.mxu0 0.0
        %1122 = vmatpush1.msra.mxu0 0.0
        %1123 = vmatprep.subr.mxu0 0.0
        %1124 = vmatpush1.msra.mxu0 0.0
        %1125 = vmatprep.subr.mxu0 0.0
        %1126 = vmatpush1.msra.mxu0 0.0
        %1127 = vmatprep.subr.mxu0 0.0
        %1128 = vmatpush1.msra.mxu0 0.0
        %1129 = vmatprep.subr.mxu0 0.0
        %1130 = vmatpush1.msra.mxu0 0.0
        %1131 = vmatprep.subr.mxu0 0.0
        %1132 = vmatpush1.msra.mxu0 0.0
        %1133 = vmatprep.subr.mxu0 0.0
        %1134 = vmatpush1.msra.mxu0 0.0
        %1135 = vmatprep.subr.mxu0 0.0
        %1136 = vmatpush1.msra.mxu0 0.0
        %1137 = vmatprep.subr.mxu0 0.0
        %1138 = vmatpush1.msra.mxu0 0.0
        %1139 = vmatprep.subr.mxu0 0.0
        %1140 = vmatpush1.msra.mxu0 0.0
        %1141 = vmatprep.subr.mxu0 0.0
        %1142 = vmatpush1.msra.mxu0 0.0
        %1143 = vmatprep.subr.mxu0 0.0
        %1144 = vmatpush1.msra.mxu0 0.0
        %1145 = vmatprep.subr.mxu0 0.0
        %1146 = vmatpush1.msra.mxu0 0.0
        %1147 = vmatprep.subr.mxu0 0.0
        %1148 = vmatpush1.msra.mxu0 0.0
        %1149 = vmatprep.subr.mxu0 0.0
        %1150 = vmatpush1.msra.mxu0 0.0
        %1151 = vmatprep.subr.mxu0 0.0
        %1152 = vmatpush1.msra.mxu0 0.0
        %1153 = vmatprep.subr.mxu0 0.0
        %1154 = vmatpush1.msra.mxu0 0.0
        %1155 = vmatprep.subr.mxu0 0.0
        %1156 = vmatpush1.msra.mxu0 0.0
        %1157 = vmatprep.mubr.f32.mxu0 0.0
        %1158 = vmatmul.mubr.f32.gmra.mrb[0].mxu0 %v1091
        %v1159 = vpop.f32.mrb[0].mxu0
        %v1160 = vadd.f32 0.0, %v1159
        %v1161 = vpop.f32.mrb[0].mxu0
        %v1162 = vadd.f32 0.0, %v1161
        %1163 = vdwg.mxu0
        %1164 = vmatprep.subr.mxu0 0.0
        %1165 = vmatpush1.msra.mxu0 %v1086
        %1166 = vmatprep.subr.mxu0 0.0
        %1167 = vmatpush1.msra.mxu0 0.0
        %1168 = vmatprep.subr.mxu0 0.0
        %1169 = vmatpush1.msra.mxu0 0.0
        %1170 = vmatprep.subr.mxu0 0.0
        %1171 = vmatpush1.msra.mxu0 0.0
        %1172 = vmatprep.subr.mxu0 0.0
        %1173 = vmatpush1.msra.mxu0 0.0
        %1174 = vmatprep.subr.mxu0 0.0
        %1175 = vmatpush1.msra.mxu0 0.0
        %1176 = vmatprep.subr.mxu0 0.0
        %1177 = vmatpush1.msra.mxu0 0.0
        %1178 = vmatprep.subr.mxu0 0.0
        %1179 = vmatpush1.msra.mxu0 0.0
        %1180 = vmatprep.subr.mxu0 0.0
        %1181 = vmatpush1.msra.mxu0 0.0
        %1182 = vmatprep.subr.mxu0 0.0
        %1183 = vmatpush1.msra.mxu0 0.0
        %1184 = vmatprep.subr.mxu0 0.0
        %1185 = vmatpush1.msra.mxu0 0.0
        %1186 = vmatprep.subr.mxu0 0.0
        %1187 = vmatpush1.msra.mxu0 0.0
        %1188 = vmatprep.subr.mxu0 0.0
        %1189 = vmatpush1.msra.mxu0 0.0
        %1190 = vmatprep.subr.mxu0 0.0
        %1191 = vmatpush1.msra.mxu0 0.0
        %1192 = vmatprep.subr.mxu0 0.0
        %1193 = vmatpush1.msra.mxu0 0.0
        %1194 = vmatprep.subr.mxu0 0.0
        %1195 = vmatpush1.msra.mxu0 0.0
        %1196 = vmatprep.subr.mxu0 0.0
        %1197 = vmatpush1.msra.mxu0 0.0
        %1198 = vmatprep.subr.mxu0 0.0
        %1199 = vmatpush1.msra.mxu0 0.0
        %1200 = vmatprep.subr.mxu0 0.0
        %1201 = vmatpush1.msra.mxu0 0.0
        %1202 = vmatprep.subr.mxu0 0.0
        %1203 = vmatpush1.msra.mxu0 0.0
        %1204 = vmatprep.subr.mxu0 0.0
        %1205 = vmatpush1.msra.mxu0 0.0
        %1206 = vmatprep.subr.mxu0 0.0
        %1207 = vmatpush1.msra.mxu0 0.0
        %1208 = vmatprep.subr.mxu0 0.0
        %1209 = vmatpush1.msra.mxu0 0.0
        %1210 = vmatprep.subr.mxu0 0.0
        %1211 = vmatpush1.msra.mxu0 0.0
        %1212 = vmatprep.subr.mxu0 0.0
        %1213 = vmatpush1.msra.mxu0 0.0
        %1214 = vmatprep.subr.mxu0 0.0
        %1215 = vmatpush1.msra.mxu0 0.0
        %1216 = vmatprep.subr.mxu0 0.0
        %1217 = vmatpush1.msra.mxu0 0.0
        %1218 = vmatprep.subr.mxu0 0.0
        %1219 = vmatpush1.msra.mxu0 0.0
        %1220 = vmatprep.subr.mxu0 0.0
        %1221 = vmatpush1.msra.mxu0 0.0
        %1222 = vmatprep.subr.mxu0 0.0
        %1223 = vmatpush1.msra.mxu0 0.0
        %1224 = vmatprep.subr.mxu0 0.0
        %1225 = vmatpush1.msra.mxu0 0.0
        %1226 = vmatprep.subr.mxu0 0.0
        %1227 = vmatpush1.msra.mxu0 0.0
        %1228 = vmatprep.mubr.f32.mxu0 0.0
        %1229 = vmatmul.mubr.f32.gmra.mrb[0].mxu0 %v1091
        %v1230 = vpop.f32.mrb[0].mxu0
        %v1231 = vadd.f32 0.0, %v1230
        %v1232 = vpop.f32.mrb[0].mxu0
        %1233 = vdwg.mxu0
        %v1234 = vadd.f32 %v1070, %v1160
        %v1235 = vadd.f32 %v1071, %v1162
        %v1236 = vadd.f32 %v1072, %v1231
        %s1237 = scalar_lea.vmem [#allocation2], 40
        %v1238 = vld [vmem:[%s1237] sm:$0xff]
        %1239 = vrot.lane.b32.xlu0 %v430, 108
        %v1240 = vpop.permute.xlu0 %1239
        %1241 = vrot.lane.b32.xlu0 %v431, 108
        %v1242 = vpop.permute.xlu0 %1241
        %1243 = vrot.lane.b32.xlu0 %v432, 108
        %v1244 = vpop.permute.xlu0 %1243
        %1245 = vrot.lane.b32.xlu0 %v433, 108
        %v1246 = vpop.permute.xlu0 %1245
        %vm1247 = vcmask 883712
        %v1248 = vsel %vm1247, %v1240, %v1242
        %v1249 = vsel %vm1247, %v1242, %v1244
        %v1250 = vsel %vm1247, %v1244, %v1246
        %v1255 = vsel %vm456, %v1238, 0
        %1257 = vmatprep.subr.mxu0 %v1249
        %1258 = vmatpush1.msra.mxu0 %v1248
        %1259 = vmatprep.subr.mxu0 0.0
        %1260 = vmatpush1.msra.mxu0 0.0
        %1261 = vmatprep.subr.mxu0 0.0
        %1262 = vmatpush1.msra.mxu0 0.0
        %1263 = vmatprep.subr.mxu0 0.0
        %1264 = vmatpush1.msra.mxu0 0.0
        %1265 = vmatprep.subr.mxu0 0.0
        %1266 = vmatpush1.msra.mxu0 0.0
        %1267 = vmatprep.subr.mxu0 0.0
        %1268 = vmatpush1.msra.mxu0 0.0
        %1269 = vmatprep.subr.mxu0 0.0
        %1270 = vmatpush1.msra.mxu0 0.0
        %1271 = vmatprep.subr.mxu0 0.0
        %1272 = vmatpush1.msra.mxu0 0.0
        %1273 = vmatprep.subr.mxu0 0.0
        %1274 = vmatpush1.msra.mxu0 0.0
        %1275 = vmatprep.subr.mxu0 0.0
        %1276 = vmatpush1.msra.mxu0 0.0
        %1277 = vmatprep.subr.mxu0 0.0
        %1278 = vmatpush1.msra.mxu0 0.0
        %1279 = vmatprep.subr.mxu0 0.0
        %1280 = vmatpush1.msra.mxu0 0.0
        %1281 = vmatprep.subr.mxu0 0.0
        %1282 = vmatpush1.msra.mxu0 0.0
        %1283 = vmatprep.subr.mxu0 0.0
        %1284 = vmatpush1.msra.mxu0 0.0
        %1285 = vmatprep.subr.mxu0 0.0
        %1286 = vmatpush1.msra.mxu0 0.0
        %1287 = vmatprep.subr.mxu0 0.0
        %1288 = vmatpush1.msra.mxu0 0.0
        %1289 = vmatprep.subr.mxu0 0.0
        %1290 = vmatpush1.msra.mxu0 0.0
        %1291 = vmatprep.subr.mxu0 0.0
        %1292 = vmatpush1.msra.mxu0 0.0
        %1293 = vmatprep.subr.mxu0 0.0
        %1294 = vmatpush1.msra.mxu0 0.0
        %1295 = vmatprep.subr.mxu0 0.0
        %1296 = vmatpush1.msra.mxu0 0.0
        %1297 = vmatprep.subr.mxu0 0.0
        %1298 = vmatpush1.msra.mxu0 0.0
        %1299 = vmatprep.subr.mxu0 0.0
        %1300 = vmatpush1.msra.mxu0 0.0
        %1301 = vmatprep.subr.mxu0 0.0
        %1302 = vmatpush1.msra.mxu0 0.0
        %1303 = vmatprep.subr.mxu0 0.0
        %1304 = vmatpush1.msra.mxu0 0.0
        %1305 = vmatprep.subr.mxu0 0.0
        %1306 = vmatpush1.msra.mxu0 0.0
        %1307 = vmatprep.subr.mxu0 0.0
        %1308 = vmatpush1.msra.mxu0 0.0
        %1309 = vmatprep.subr.mxu0 0.0
        %1310 = vmatpush1.msra.mxu0 0.0
        %1311 = vmatprep.subr.mxu0 0.0
        %1312 = vmatpush1.msra.mxu0 0.0
        %1313 = vmatprep.subr.mxu0 0.0
        %1314 = vmatpush1.msra.mxu0 0.0
        %1315 = vmatprep.subr.mxu0 0.0
        %1316 = vmatpush1.msra.mxu0 0.0
        %1317 = vmatprep.subr.mxu0 0.0
        %1318 = vmatpush1.msra.mxu0 0.0
        %1319 = vmatprep.subr.mxu0 0.0
        %1320 = vmatpush1.msra.mxu0 0.0
        %1321 = vmatprep.mubr.f32.mxu0 0.0
        %1322 = vmatmul.mubr.f32.gmra.mrb[0].mxu0 %v1255
        %v1323 = vpop.f32.mrb[0].mxu0
        %v1324 = vadd.f32 0.0, %v1323
        %v1325 = vpop.f32.mrb[0].mxu0
        %v1326 = vadd.f32 0.0, %v1325
        %1327 = vdwg.mxu0
        %1328 = vmatprep.subr.mxu0 0.0
        %1329 = vmatpush1.msra.mxu0 %v1250
        %1330 = vmatprep.subr.mxu0 0.0
        %1331 = vmatpush1.msra.mxu0 0.0
        %1332 = vmatprep.subr.mxu0 0.0
        %1333 = vmatpush1.msra.mxu0 0.0
        %1334 = vmatprep.subr.mxu0 0.0
        %1335 = vmatpush1.msra.mxu0 0.0
        %1336 = vmatprep.subr.mxu0 0.0
        %1337 = vmatpush1.msra.mxu0 0.0
        %1338 = vmatprep.subr.mxu0 0.0
        %1339 = vmatpush1.msra.mxu0 0.0
        %1340 = vmatprep.subr.mxu0 0.0
        %1341 = vmatpush1.msra.mxu0 0.0
        %1342 = vmatprep.subr.mxu0 0.0
        %1343 = vmatpush1.msra.mxu0 0.0
        %1344 = vmatprep.subr.mxu0 0.0
        %1345 = vmatpush1.msra.mxu0 0.0
        %1346 = vmatprep.subr.mxu0 0.0
        %1347 = vmatpush1.msra.mxu0 0.0
        %1348 = vmatprep.subr.mxu0 0.0
        %1349 = vmatpush1.msra.mxu0 0.0
        %1350 = vmatprep.subr.mxu0 0.0
        %1351 = vmatpush1.msra.mxu0 0.0
        %1352 = vmatprep.subr.mxu0 0.0
        %1353 = vmatpush1.msra.mxu0 0.0
        %1354 = vmatprep.subr.mxu0 0.0
        %1355 = vmatpush1.msra.mxu0 0.0
        %1356 = vmatprep.subr.mxu0 0.0
        %1357 = vmatpush1.msra.mxu0 0.0
        %1358 = vmatprep.subr.mxu0 0.0
        %1359 = vmatpush1.msra.mxu0 0.0
        %1360 = vmatprep.subr.mxu0 0.0
        %1361 = vmatpush1.msra.mxu0 0.0
        %1362 = vmatprep.subr.mxu0 0.0
        %1363 = vmatpush1.msra.mxu0 0.0
        %1364 = vmatprep.subr.mxu0 0.0
        %1365 = vmatpush1.msra.mxu0 0.0
        %1366 = vmatprep.subr.mxu0 0.0
        %1367 = vmatpush1.msra.mxu0 0.0
        %1368 = vmatprep.subr.mxu0 0.0
        %1369 = vmatpush1.msra.mxu0 0.0
        %1370 = vmatprep.subr.mxu0 0.0
        %1371 = vmatpush1.msra.mxu0 0.0
        %1372 = vmatprep.subr.mxu0 0.0
        %1373 = vmatpush1.msra.mxu0 0.0
        %1374 = vmatprep.subr.mxu0 0.0
        %1375 = vmatpush1.msra.mxu0 0.0
        %1376 = vmatprep.subr.mxu0 0.0
        %1377 = vmatpush1.msra.mxu0 0.0
        %1378 = vmatprep.subr.mxu0 0.0
        %1379 = vmatpush1.msra.mxu0 0.0
        %1380 = vmatprep.subr.mxu0 0.0
        %1381 = vmatpush1.msra.mxu0 0.0
        %1382 = vmatprep.subr.mxu0 0.0
        %1383 = vmatpush1.msra.mxu0 0.0
        %1384 = vmatprep.subr.mxu0 0.0
        %1385 = vmatpush1.msra.mxu0 0.0
        %1386 = vmatprep.subr.mxu0 0.0
        %1387 = vmatpush1.msra.mxu0 0.0
        %1388 = vmatprep.subr.mxu0 0.0
        %1389 = vmatpush1.msra.mxu0 0.0
        %1390 = vmatprep.subr.mxu0 0.0
        %1391 = vmatpush1.msra.mxu0 0.0
        %1392 = vmatprep.mubr.f32.mxu0 0.0
        %1393 = vmatmul.mubr.f32.gmra.mrb[0].mxu0 %v1255
        %v1394 = vpop.f32.mrb[0].mxu0
        %v1395 = vadd.f32 0.0, %v1394
        %v1396 = vpop.f32.mrb[0].mxu0
        %1397 = vdwg.mxu0
        %v1398 = vadd.f32 %v1234, %v1324
        %v1399 = vadd.f32 %v1235, %v1326
        %v1400 = vadd.f32 %v1236, %v1395
        %s1401 = scalar_lea.vmem [#allocation2], 48
        %v1402 = vld [vmem:[%s1401] sm:$0xff]
        %1403 = vrot.lane.b32.xlu0 %v430, 92
        %v1404 = vpop.permute.xlu0 %1403
        %1405 = vrot.lane.b32.xlu0 %v431, 92
        %v1406 = vpop.permute.xlu0 %1405
        %1407 = vrot.lane.b32.xlu0 %v432, 92
        %v1408 = vpop.permute.xlu0 %1407
        %1409 = vrot.lane.b32.xlu0 %v433, 92
        %v1410 = vpop.permute.xlu0 %1409
        %vm1411 = vcmask 752640
        %v1412 = vsel %vm1411, %v1404, %v1406
        %v1413 = vsel %vm1411, %v1406, %v1408
        %v1414 = vsel %vm1411, %v1408, %v1410
        %v1419 = vsel %vm456, %v1402, 0
        %1421 = vmatprep.subr.mxu0 %v1413
        %1422 = vmatpush1.msra.mxu0 %v1412
        %1423 = vmatprep.subr.mxu0 0.0
        %1424 = vmatpush1.msra.mxu0 0.0
        %1425 = vmatprep.subr.mxu0 0.0
        %1426 = vmatpush1.msra.mxu0 0.0
        %1427 = vmatprep.subr.mxu0 0.0
        %1428 = vmatpush1.msra.mxu0 0.0
        %1429 = vmatprep.subr.mxu0 0.0
        %1430 = vmatpush1.msra.mxu0 0.0
        %1431 = vmatprep.subr.mxu0 0.0
        %1432 = vmatpush1.msra.mxu0 0.0
        %1433 = vmatprep.subr.mxu0 0.0
        %1434 = vmatpush1.msra.mxu0 0.0
        %1435 = vmatprep.subr.mxu0 0.0
        %1436 = vmatpush1.msra.mxu0 0.0
        %1437 = vmatprep.subr.mxu0 0.0
        %1438 = vmatpush1.msra.mxu0 0.0
        %1439 = vmatprep.subr.mxu0 0.0
        %1440 = vmatpush1.msra.mxu0 0.0
        %1441 = vmatprep.subr.mxu0 0.0
        %1442 = vmatpush1.msra.mxu0 0.0
        %1443 = vmatprep.subr.mxu0 0.0
        %1444 = vmatpush1.msra.mxu0 0.0
        %1445 = vmatprep.subr.mxu0 0.0
        %1446 = vmatpush1.msra.mxu0 0.0
        %1447 = vmatprep.subr.mxu0 0.0
        %1448 = vmatpush1.msra.mxu0 0.0
        %1449 = vmatprep.subr.mxu0 0.0
        %1450 = vmatpush1.msra.mxu0 0.0
        %1451 = vmatprep.subr.mxu0 0.0
        %1452 = vmatpush1.msra.mxu0 0.0
        %1453 = vmatprep.subr.mxu0 0.0
        %1454 = vmatpush1.msra.mxu0 0.0
        %1455 = vmatprep.subr.mxu0 0.0
        %1456 = vmatpush1.msra.mxu0 0.0
        %1457 = vmatprep.subr.mxu0 0.0
        %1458 = vmatpush1.msra.mxu0 0.0
        %1459 = vmatprep.subr.mxu0 0.0
        %1460 = vmatpush1.msra.mxu0 0.0
        %1461 = vmatprep.subr.mxu0 0.0
        %1462 = vmatpush1.msra.mxu0 0.0
        %1463 = vmatprep.subr.mxu0 0.0
        %1464 = vmatpush1.msra.mxu0 0.0
        %1465 = vmatprep.subr.mxu0 0.0
        %1466 = vmatpush1.msra.mxu0 0.0
        %1467 = vmatprep.subr.mxu0 0.0
        %1468 = vmatpush1.msra.mxu0 0.0
        %1469 = vmatprep.subr.mxu0 0.0
        %1470 = vmatpush1.msra.mxu0 0.0
        %1471 = vmatprep.subr.mxu0 0.0
        %1472 = vmatpush1.msra.mxu0 0.0
        %1473 = vmatprep.subr.mxu0 0.0
        %1474 = vmatpush1.msra.mxu0 0.0
        %1475 = vmatprep.subr.mxu0 0.0
        %1476 = vmatpush1.msra.mxu0 0.0
        %1477 = vmatprep.subr.mxu0 0.0
        %1478 = vmatpush1.msra.mxu0 0.0
        %1479 = vmatprep.subr.mxu0 0.0
        %1480 = vmatpush1.msra.mxu0 0.0
        %1481 = vmatprep.subr.mxu0 0.0
        %1482 = vmatpush1.msra.mxu0 0.0
        %1483 = vmatprep.subr.mxu0 0.0
        %1484 = vmatpush1.msra.mxu0 0.0
        %1485 = vmatprep.mubr.f32.mxu0 0.0
        %1486 = vmatmul.mubr.f32.gmra.mrb[0].mxu0 %v1419
        %v1487 = vpop.f32.mrb[0].mxu0
        %v1488 = vadd.f32 0.0, %v1487
        %v1489 = vpop.f32.mrb[0].mxu0
        %v1490 = vadd.f32 0.0, %v1489
        %1491 = vdwg.mxu0
        %1492 = vmatprep.subr.mxu0 0.0
        %1493 = vmatpush1.msra.mxu0 %v1414
        %1494 = vmatprep.subr.mxu0 0.0
        %1495 = vmatpush1.msra.mxu0 0.0
        %1496 = vmatprep.subr.mxu0 0.0
        %1497 = vmatpush1.msra.mxu0 0.0
        %1498 = vmatprep.subr.mxu0 0.0
        %1499 = vmatpush1.msra.mxu0 0.0
        %1500 = vmatprep.subr.mxu0 0.0
        %1501 = vmatpush1.msra.mxu0 0.0
        %1502 = vmatprep.subr.mxu0 0.0
        %1503 = vmatpush1.msra.mxu0 0.0
        %1504 = vmatprep.subr.mxu0 0.0
        %1505 = vmatpush1.msra.mxu0 0.0
        %1506 = vmatprep.subr.mxu0 0.0
        %1507 = vmatpush1.msra.mxu0 0.0
        %1508 = vmatprep.subr.mxu0 0.0
        %1509 = vmatpush1.msra.mxu0 0.0
        %1510 = vmatprep.subr.mxu0 0.0
        %1511 = vmatpush1.msra.mxu0 0.0
        %1512 = vmatprep.subr.mxu0 0.0
        %1513 = vmatpush1.msra.mxu0 0.0
        %1514 = vmatprep.subr.mxu0 0.0
        %1515 = vmatpush1.msra.mxu0 0.0
        %1516 = vmatprep.subr.mxu0 0.0
        %1517 = vmatpush1.msra.mxu0 0.0
        %1518 = vmatprep.subr.mxu0 0.0
        %1519 = vmatpush1.msra.mxu0 0.0
        %1520 = vmatprep.subr.mxu0 0.0
        %1521 = vmatpush1.msra.mxu0 0.0
        %1522 = vmatprep.subr.mxu0 0.0
        %1523 = vmatpush1.msra.mxu0 0.0
        %1524 = vmatprep.subr.mxu0 0.0
        %1525 = vmatpush1.msra.mxu0 0.0
        %1526 = vmatprep.subr.mxu0 0.0
        %1527 = vmatpush1.msra.mxu0 0.0
        %1528 = vmatprep.subr.mxu0 0.0
        %1529 = vmatpush1.msra.mxu0 0.0
        %1530 = vmatprep.subr.mxu0 0.0
        %1531 = vmatpush1.msra.mxu0 0.0
        %1532 = vmatprep.subr.mxu0 0.0
        %1533 = vmatpush1.msra.mxu0 0.0
        %1534 = vmatprep.subr.mxu0 0.0
        %1535 = vmatpush1.msra.mxu0 0.0
        %1536 = vmatprep.subr.mxu0 0.0
        %1537 = vmatpush1.msra.mxu0 0.0
        %1538 = vmatprep.subr.mxu0 0.0
        %1539 = vmatpush1.msra.mxu0 0.0
        %1540 = vmatprep.subr.mxu0 0.0
        %1541 = vmatpush1.msra.mxu0 0.0
        %1542 = vmatprep.subr.mxu0 0.0
        %1543 = vmatpush1.msra.mxu0 0.0
        %1544 = vmatprep.subr.mxu0 0.0
        %1545 = vmatpush1.msra.mxu0 0.0
        %1546 = vmatprep.subr.mxu0 0.0
        %1547 = vmatpush1.msra.mxu0 0.0
        %1548 = vmatprep.subr.mxu0 0.0
        %1549 = vmatpush1.msra.mxu0 0.0
        %1550 = vmatprep.subr.mxu0 0.0
        %1551 = vmatpush1.msra.mxu0 0.0
        %1552 = vmatprep.subr.mxu0 0.0
        %1553 = vmatpush1.msra.mxu0 0.0
        %1554 = vmatprep.subr.mxu0 0.0
        %1555 = vmatpush1.msra.mxu0 0.0
        %1556 = vmatprep.mubr.f32.mxu0 0.0
        %1557 = vmatmul.mubr.f32.gmra.mrb[0].mxu0 %v1419
        %v1558 = vpop.f32.mrb[0].mxu0
        %v1559 = vadd.f32 0.0, %v1558
        %v1560 = vpop.f32.mrb[0].mxu0
        %1561 = vdwg.mxu0
        %v1562 = vadd.f32 %v1398, %v1488
        %v1563 = vadd.f32 %v1399, %v1490
        %v1564 = vadd.f32 %v1400, %v1559
        %s1565 = scalar_lea.vmem [#allocation2], 56
        %v1566 = vld [vmem:[%s1565] sm:$0xff]
        %1567 = vrot.lane.b32.xlu0 %v430, 91
        %v1568 = vpop.permute.xlu0 %1567
        %1569 = vrot.lane.b32.xlu0 %v431, 91
        %v1570 = vpop.permute.xlu0 %1569
        %1571 = vrot.lane.b32.xlu0 %v432, 91
        %v1572 = vpop.permute.xlu0 %1571
        %1573 = vrot.lane.b32.xlu0 %v433, 91
        %v1574 = vpop.permute.xlu0 %1573
        %vm1575 = vcmask 744448
        %v1576 = vsel %vm1575, %v1568, %v1570
        %v1577 = vsel %vm1575, %v1570, %v1572
        %v1578 = vsel %vm1575, %v1572, %v1574
        %v1583 = vsel %vm456, %v1566, 0
        %1585 = vmatprep.subr.mxu0 %v1577
        %1586 = vmatpush1.msra.mxu0 %v1576
        %1587 = vmatprep.subr.mxu0 0.0
        %1588 = vmatpush1.msra.mxu0 0.0
        %1589 = vmatprep.subr.mxu0 0.0
        %1590 = vmatpush1.msra.mxu0 0.0
        %1591 = vmatprep.subr.mxu0 0.0
        %1592 = vmatpush1.msra.mxu0 0.0
        %1593 = vmatprep.subr.mxu0 0.0
        %1594 = vmatpush1.msra.mxu0 0.0
        %1595 = vmatprep.subr.mxu0 0.0
        %1596 = vmatpush1.msra.mxu0 0.0
        %1597 = vmatprep.subr.mxu0 0.0
        %1598 = vmatpush1.msra.mxu0 0.0
        %1599 = vmatprep.subr.mxu0 0.0
        %1600 = vmatpush1.msra.mxu0 0.0
        %1601 = vmatprep.subr.mxu0 0.0
        %1602 = vmatpush1.msra.mxu0 0.0
        %1603 = vmatprep.subr.mxu0 0.0
        %1604 = vmatpush1.msra.mxu0 0.0
        %1605 = vmatprep.subr.mxu0 0.0
        %1606 = vmatpush1.msra.mxu0 0.0
        %1607 = vmatprep.subr.mxu0 0.0
        %1608 = vmatpush1.msra.mxu0 0.0
        %1609 = vmatprep.subr.mxu0 0.0
        %1610 = vmatpush1.msra.mxu0 0.0
        %1611 = vmatprep.subr.mxu0 0.0
        %1612 = vmatpush1.msra.mxu0 0.0
        %1613 = vmatprep.subr.mxu0 0.0
        %1614 = vmatpush1.msra.mxu0 0.0
        %1615 = vmatprep.subr.mxu0 0.0
        %1616 = vmatpush1.msra.mxu0 0.0
        %1617 = vmatprep.subr.mxu0 0.0
        %1618 = vmatpush1.msra.mxu0 0.0
        %1619 = vmatprep.subr.mxu0 0.0
        %1620 = vmatpush1.msra.mxu0 0.0
        %1621 = vmatprep.subr.mxu0 0.0
        %1622 = vmatpush1.msra.mxu0 0.0
        %1623 = vmatprep.subr.mxu0 0.0
        %1624 = vmatpush1.msra.mxu0 0.0
        %1625 = vmatprep.subr.mxu0 0.0
        %1626 = vmatpush1.msra.mxu0 0.0
        %1627 = vmatprep.subr.mxu0 0.0
        %1628 = vmatpush1.msra.mxu0 0.0
        %1629 = vmatprep.subr.mxu0 0.0
        %1630 = vmatpush1.msra.mxu0 0.0
        %1631 = vmatprep.subr.mxu0 0.0
        %1632 = vmatpush1.msra.mxu0 0.0
        %1633 = vmatprep.subr.mxu0 0.0
        %1634 = vmatpush1.msra.mxu0 0.0
        %1635 = vmatprep.subr.mxu0 0.0
        %1636 = vmatpush1.msra.mxu0 0.0
        %1637 = vmatprep.subr.mxu0 0.0
        %1638 = vmatpush1.msra.mxu0 0.0
        %1639 = vmatprep.subr.mxu0 0.0
        %1640 = vmatpush1.msra.mxu0 0.0
        %1641 = vmatprep.subr.mxu0 0.0
        %1642 = vmatpush1.msra.mxu0 0.0
        %1643 = vmatprep.subr.mxu0 0.0
        %1644 = vmatpush1.msra.mxu0 0.0
        %1645 = vmatprep.subr.mxu0 0.0
        %1646 = vmatpush1.msra.mxu0 0.0
        %1647 = vmatprep.subr.mxu0 0.0
        %1648 = vmatpush1.msra.mxu0 0.0
        %1649 = vmatprep.mubr.f32.mxu0 0.0
        %1650 = vmatmul.mubr.f32.gmra.mrb[0].mxu0 %v1583
        %v1651 = vpop.f32.mrb[0].mxu0
        %v1652 = vadd.f32 0.0, %v1651
        %v1653 = vpop.f32.mrb[0].mxu0
        %v1654 = vadd.f32 0.0, %v1653
        %1655 = vdwg.mxu0
        %1656 = vmatprep.subr.mxu0 0.0
        %1657 = vmatpush1.msra.mxu0 %v1578
        %1658 = vmatprep.subr.mxu0 0.0
        %1659 = vmatpush1.msra.mxu0 0.0
        %1660 = vmatprep.subr.mxu0 0.0
        %1661 = vmatpush1.msra.mxu0 0.0
        %1662 = vmatprep.subr.mxu0 0.0
        %1663 = vmatpush1.msra.mxu0 0.0
        %1664 = vmatprep.subr.mxu0 0.0
        %1665 = vmatpush1.msra.mxu0 0.0
        %1666 = vmatprep.subr.mxu0 0.0
        %1667 = vmatpush1.msra.mxu0 0.0
        %1668 = vmatprep.subr.mxu0 0.0
        %1669 = vmatpush1.msra.mxu0 0.0
        %1670 = vmatprep.subr.mxu0 0.0
        %1671 = vmatpush1.msra.mxu0 0.0
        %1672 = vmatprep.subr.mxu0 0.0
        %1673 = vmatpush1.msra.mxu0 0.0
        %1674 = vmatprep.subr.mxu0 0.0
        %1675 = vmatpush1.msra.mxu0 0.0
        %1676 = vmatprep.subr.mxu0 0.0
        %1677 = vmatpush1.msra.mxu0 0.0
        %1678 = vmatprep.subr.mxu0 0.0
        %1679 = vmatpush1.msra.mxu0 0.0
        %1680 = vmatprep.subr.mxu0 0.0
        %1681 = vmatpush1.msra.mxu0 0.0
        %1682 = vmatprep.subr.mxu0 0.0
        %1683 = vmatpush1.msra.mxu0 0.0
        %1684 = vmatprep.subr.mxu0 0.0
        %1685 = vmatpush1.msra.mxu0 0.0
        %1686 = vmatprep.subr.mxu0 0.0
        %1687 = vmatpush1.msra.mxu0 0.0
        %1688 = vmatprep.subr.mxu0 0.0
        %1689 = vmatpush1.msra.mxu0 0.0
        %1690 = vmatprep.subr.mxu0 0.0
        %1691 = vmatpush1.msra.mxu0 0.0
        %1692 = vmatprep.subr.mxu0 0.0
        %1693 = vmatpush1.msra.mxu0 0.0
        %1694 = vmatprep.subr.mxu0 0.0
        %1695 = vmatpush1.msra.mxu0 0.0
        %1696 = vmatprep.subr.mxu0 0.0
        %1697 = vmatpush1.msra.mxu0 0.0
        %1698 = vmatprep.subr.mxu0 0.0
        %1699 = vmatpush1.msra.mxu0 0.0
        %1700 = vmatprep.subr.mxu0 0.0
        %1701 = vmatpush1.msra.mxu0 0.0
        %1702 = vmatprep.subr.mxu0 0.0
        %1703 = vmatpush1.msra.mxu0 0.0
        %1704 = vmatprep.subr.mxu0 0.0
        %1705 = vmatpush1.msra.mxu0 0.0
        %1706 = vmatprep.subr.mxu0 0.0
        %1707 = vmatpush1.msra.mxu0 0.0
        %1708 = vmatprep.subr.mxu0 0.0
        %1709 = vmatpush1.msra.mxu0 0.0
        %1710 = vmatprep.subr.mxu0 0.0
        %1711 = vmatpush1.msra.mxu0 0.0
        %1712 = vmatprep.subr.mxu0 0.0
        %1713 = vmatpush1.msra.mxu0 0.0
        %1714 = vmatprep.subr.mxu0 0.0
        %1715 = vmatpush1.msra.mxu0 0.0
        %1716 = vmatprep.subr.mxu0 0.0
        %1717 = vmatpush1.msra.mxu0 0.0
        %1718 = vmatprep.subr.mxu0 0.0
        %1719 = vmatpush1.msra.mxu0 0.0
        %1720 = vmatprep.mubr.f32.mxu0 0.0
        %1721 = vmatmul.mubr.f32.gmra.mrb[0].mxu0 %v1583
        %v1722 = vpop.f32.mrb[0].mxu0
        %v1723 = vadd.f32 0.0, %v1722
        %v1724 = vpop.f32.mrb[0].mxu0
        %1725 = vdwg.mxu0
        %v1726 = vadd.f32 %v1562, %v1652
        %v1727 = vadd.f32 %v1563, %v1654
        %v1728 = vadd.f32 %v1564, %v1723
        %s1729 = scalar_lea.vmem [#allocation2], 64
        %v1730 = vld [vmem:[%s1729] sm:$0xff]
        %1731 = vrot.lane.b32.xlu0 %v430, 90
        %v1732 = vpop.permute.xlu0 %1731
        %1733 = vrot.lane.b32.xlu0 %v431, 90
        %v1734 = vpop.permute.xlu0 %1733
        %1735 = vrot.lane.b32.xlu0 %v432, 90
        %v1736 = vpop.permute.xlu0 %1735
        %1737 = vrot.lane.b32.xlu0 %v433, 90
        %v1738 = vpop.permute.xlu0 %1737
        %vm1739 = vcmask 736256
        %v1740 = vsel %vm1739, %v1732, %v1734
        %v1741 = vsel %vm1739, %v1734, %v1736
        %v1742 = vsel %vm1739, %v1736, %v1738
        %v1747 = vsel %vm456, %v1730, 0
        %1749 = vmatprep.subr.mxu0 %v1741
        %1750 = vmatpush1.msra.mxu0 %v1740
        %1751 = vmatprep.subr.mxu0 0.0
        %1752 = vmatpush1.msra.mxu0 0.0
        %1753 = vmatprep.subr.mxu0 0.0
        %1754 = vmatpush1.msra.mxu0 0.0
        %1755 = vmatprep.subr.mxu0 0.0
        %1756 = vmatpush1.msra.mxu0 0.0
        %1757 = vmatprep.subr.mxu0 0.0
        %1758 = vmatpush1.msra.mxu0 0.0
        %1759 = vmatprep.subr.mxu0 0.0
        %1760 = vmatpush1.msra.mxu0 0.0
        %1761 = vmatprep.subr.mxu0 0.0
        %1762 = vmatpush1.msra.mxu0 0.0
        %1763 = vmatprep.subr.mxu0 0.0
        %1764 = vmatpush1.msra.mxu0 0.0
        %1765 = vmatprep.subr.mxu0 0.0
        %1766 = vmatpush1.msra.mxu0 0.0
        %1767 = vmatprep.subr.mxu0 0.0
        %1768 = vmatpush1.msra.mxu0 0.0
        %1769 = vmatprep.subr.mxu0 0.0
        %1770 = vmatpush1.msra.mxu0 0.0
        %1771 = vmatprep.subr.mxu0 0.0
        %1772 = vmatpush1.msra.mxu0 0.0
        %1773 = vmatprep.subr.mxu0 0.0
        %1774 = vmatpush1.msra.mxu0 0.0
        %1775 = vmatprep.subr.mxu0 0.0
        %1776 = vmatpush1.msra.mxu0 0.0
        %1777 = vmatprep.subr.mxu0 0.0
        %1778 = vmatpush1.msra.mxu0 0.0
        %1779 = vmatprep.subr.mxu0 0.0
        %1780 = vmatpush1.msra.mxu0 0.0
        %1781 = vmatprep.subr.mxu0 0.0
        %1782 = vmatpush1.msra.mxu0 0.0
        %1783 = vmatprep.subr.mxu0 0.0
        %1784 = vmatpush1.msra.mxu0 0.0
        %1785 = vmatprep.subr.mxu0 0.0
        %1786 = vmatpush1.msra.mxu0 0.0
        %1787 = vmatprep.subr.mxu0 0.0
        %1788 = vmatpush1.msra.mxu0 0.0
        %1789 = vmatprep.subr.mxu0 0.0
        %1790 = vmatpush1.msra.mxu0 0.0
        %1791 = vmatprep.subr.mxu0 0.0
        %1792 = vmatpush1.msra.mxu0 0.0
        %1793 = vmatprep.subr.mxu0 0.0
        %1794 = vmatpush1.msra.mxu0 0.0
        %1795 = vmatprep.subr.mxu0 0.0
        %1796 = vmatpush1.msra.mxu0 0.0
        %1797 = vmatprep.subr.mxu0 0.0
        %1798 = vmatpush1.msra.mxu0 0.0
        %1799 = vmatprep.subr.mxu0 0.0
        %1800 = vmatpush1.msra.mxu0 0.0
        %1801 = vmatprep.subr.mxu0 0.0
        %1802 = vmatpush1.msra.mxu0 0.0
        %1803 = vmatprep.subr.mxu0 0.0
        %1804 = vmatpush1.msra.mxu0 0.0
        %1805 = vmatprep.subr.mxu0 0.0
        %1806 = vmatpush1.msra.mxu0 0.0
        %1807 = vmatprep.subr.mxu0 0.0
        %1808 = vmatpush1.msra.mxu0 0.0
        %1809 = vmatprep.subr.mxu0 0.0
        %1810 = vmatpush1.msra.mxu0 0.0
        %1811 = vmatprep.subr.mxu0 0.0
        %1812 = vmatpush1.msra.mxu0 0.0
        %1813 = vmatprep.mubr.f32.mxu0 0.0
        %1814 = vmatmul.mubr.f32.gmra.mrb[0].mxu0 %v1747
        %v1815 = vpop.f32.mrb[0].mxu0
        %v1816 = vadd.f32 0.0, %v1815
        %v1817 = vpop.f32.mrb[0].mxu0
        %v1818 = vadd.f32 0.0, %v1817
        %1819 = vdwg.mxu0
        %1820 = vmatprep.subr.mxu0 0.0
        %1821 = vmatpush1.msra.mxu0 %v1742
        %1822 = vmatprep.subr.mxu0 0.0
        %1823 = vmatpush1.msra.mxu0 0.0
        %1824 = vmatprep.subr.mxu0 0.0
        %1825 = vmatpush1.msra.mxu0 0.0
        %1826 = vmatprep.subr.mxu0 0.0
        %1827 = vmatpush1.msra.mxu0 0.0
        %1828 = vmatprep.subr.mxu0 0.0
        %1829 = vmatpush1.msra.mxu0 0.0
        %1830 = vmatprep.subr.mxu0 0.0
        %1831 = vmatpush1.msra.mxu0 0.0
        %1832 = vmatprep.subr.mxu0 0.0
        %1833 = vmatpush1.msra.mxu0 0.0
        %1834 = vmatprep.subr.mxu0 0.0
        %1835 = vmatpush1.msra.mxu0 0.0
        %1836 = vmatprep.subr.mxu0 0.0
        %1837 = vmatpush1.msra.mxu0 0.0
        %1838 = vmatprep.subr.mxu0 0.0
        %1839 = vmatpush1.msra.mxu0 0.0
        %1840 = vmatprep.subr.mxu0 0.0
        %1841 = vmatpush1.msra.mxu0 0.0
        %1842 = vmatprep.subr.mxu0 0.0
        %1843 = vmatpush1.msra.mxu0 0.0
        %1844 = vmatprep.subr.mxu0 0.0
        %1845 = vmatpush1.msra.mxu0 0.0
        %1846 = vmatprep.subr.mxu0 0.0
        %1847 = vmatpush1.msra.mxu0 0.0
        %1848 = vmatprep.subr.mxu0 0.0
        %1849 = vmatpush1.msra.mxu0 0.0
        %1850 = vmatprep.subr.mxu0 0.0
        %1851 = vmatpush1.msra.mxu0 0.0
        %1852 = vmatprep.subr.mxu0 0.0
        %1853 = vmatpush1.msra.mxu0 0.0
        %1854 = vmatprep.subr.mxu0 0.0
        %1855 = vmatpush1.msra.mxu0 0.0
        %1856 = vmatprep.subr.mxu0 0.0
        %1857 = vmatpush1.msra.mxu0 0.0
        %1858 = vmatprep.subr.mxu0 0.0
        %1859 = vmatpush1.msra.mxu0 0.0
        %1860 = vmatprep.subr.mxu0 0.0
        %1861 = vmatpush1.msra.mxu0 0.0
        %1862 = vmatprep.subr.mxu0 0.0
        %1863 = vmatpush1.msra.mxu0 0.0
        %1864 = vmatprep.subr.mxu0 0.0
        %1865 = vmatpush1.msra.mxu0 0.0
        %1866 = vmatprep.subr.mxu0 0.0
        %1867 = vmatpush1.msra.mxu0 0.0
        %1868 = vmatprep.subr.mxu0 0.0
        %1869 = vmatpush1.msra.mxu0 0.0
        %1870 = vmatprep.subr.mxu0 0.0
        %1871 = vmatpush1.msra.mxu0 0.0
        %1872 = vmatprep.subr.mxu0 0.0
        %1873 = vmatpush1.msra.mxu0 0.0
        %1874 = vmatprep.subr.mxu0 0.0
        %1875 = vmatpush1.msra.mxu0 0.0
        %1876 = vmatprep.subr.mxu0 0.0
        %1877 = vmatpush1.msra.mxu0 0.0
        %1878 = vmatprep.subr.mxu0 0.0
        %1879 = vmatpush1.msra.mxu0 0.0
        %1880 = vmatprep.subr.mxu0 0.0
        %1881 = vmatpush1.msra.mxu0 0.0
        %1882 = vmatprep.subr.mxu0 0.0
        %1883 = vmatpush1.msra.mxu0 0.0
        %1884 = vmatprep.mubr.f32.mxu0 0.0
        %1885 = vmatmul.mubr.f32.gmra.mrb[0].mxu0 %v1747
        %v1886 = vpop.f32.mrb[0].mxu0
        %v1887 = vadd.f32 0.0, %v1886
        %v1888 = vpop.f32.mrb[0].mxu0
        %1889 = vdwg.mxu0
        %v1890 = vadd.f32 %v1726, %v1816
        %v1891 = vadd.f32 %v1727, %v1818
        %v1892 = vadd.f32 %v1728, %v1887
        %v1893 = vld [vmem:[%s238] sm:$0xff]
        %1895 = vset.pattern.permute.xlu0 0
        %1896 = vperm.xlu0 %1895, %v1893
        %v1897 = vpop.permute.xlu0 %1896
        %v1899 = vadd.f32 %v1890, %v1897
        %v1900 = vadd.f32 %v1891, %v1897
        %v1901 = vadd.f32 %v1892, %v1897
        %1902 = vst [vmem:[%s227] sm:$0xff] %v1899
        %1903 = vst [vmem:[%s227 + $0x8] sm:$0xff] %v1900
        %1904 = vst [vmem:[%s227 + $0x10] sm:$0xff] %v1901
        %s1905 = sand.u32 %s140, 1
        %s1906 = scalar_lea.sflag [#allocation6], %s1905
        %s1907 = sand.u32 %s140, 1
        %s1908 = smul.addr %s1907, 24
        %s1909 = scalar_lea.vmem [#allocation5], %s1908
        // Predicated region
        $region113: #{tpu_custom_call.1} parent=35 // pred_check
          %p1910 = pneg %p150
        $region114: #{tpu_custom_call.1} parent=35 // pred_check_branch
          %1912 = sbr.rel (%p1910) target = $region116
        $region115: #{tpu_custom_call.1} parent=35 // pred_region
          %s1913 = smul.u32 3, %s24
          %s1915 = ssub.s32 384, 384
          %1916 = vsyncadd %s1906, %s1915
          %s1917 = smul.addr %s23, 3
          %s1918 = sadd.s32 %s1913, %s1917
          %s1919 = smul.addr %s1918, 128
          %s1920 = scalar_lea.hbm %s5, %s1919
          %s1922 = sshll.u32 %s1909, 4
          %s1923 = int_to_ptr.vmem [resolvable:$true] %s1922
          %1925 = dma.vmem_to_hbm [thread:$0]  %s1923, 384, %s1920, %s1906
        $region116: #{tpu_custom_call.1} parent=35 // pred_fallthru
          _
      $region36: #{tpu_custom_call.1} parent=5 // pred_fallthru
        _
      %p1926 = scmp.le.s32.totalorder 2, %s14
      // Predicated region
      $region117: #{tpu_custom_call.1} parent=5 // pred_check
        %p1927 = pneg %p1926
      $region118: #{tpu_custom_call.1} parent=5 // pred_check_branch
        %1929 = sbr.rel (%p1927) target = $region120
      $region119: #{tpu_custom_call.1} parent=5 // pred_region
        %s1930 = ssub.s32 %s14, 2
        // Predicated region
        $region121: #{tpu_custom_call.1} parent=119 // pred_check
          %p1931 = pneg %p156
        $region122: #{tpu_custom_call.1} parent=119 // pred_check_branch
          %1933 = sbr.rel (%p1931) target = $region124
        $region123: #{tpu_custom_call.1} parent=119 // pred_region
          %s1934 = sand.u32 %s141, 1
          %s1935 = scalar_lea.sflag [#allocation6], %s1934
          %s1936 = sand.u32 %s141, 1
          %s1937 = smul.addr %s1936, 24
          %s1938 = scalar_lea.vmem [#allocation5], %s1937
          %1939 = dma.done %s1935, 384
        $region124: #{tpu_custom_call.1} parent=119 // pred_fallthru
          _
      $region120: #{tpu_custom_call.1} parent=5 // pred_fallthru
        _
    $region6: #{tpu_custom_call.1} parent=1 // loop_footer
      %s18 = sadd.s32 1, %s14
    $region7: #{tpu_custom_call.1} parent=1 // loop_footer_branch
      %13 = sbr.rel target = $region3
    $region8: #{tpu_custom_call.1} parent=1 // loop_exit
      _
    %1940 = vsyncpa [#allocation6], 1
    %s1941 = scalar_lea.sflag [#allocation6], 1
    %1942 = vsyncpa %s1941, 1
  %1943 = vsyncmov [#allocation4]
  %s1944 = vpop.sfrf %1943
  %p1945 = scmp.eq.s32.totalorder %s1944, 0
  %p1946 = pneg %p1945
  %1948 = shalt.err (%p1946)
  %s1949 = scalar_lea.sflag [#allocation4], 1
  %1950 = vsyncmov %s1949
  %s1951 = vpop.sfrf %1950
  %p1952 = scmp.eq.s32.totalorder %s1951, 0
  %p1953 = pneg %p1952
  %1955 = shalt.err (%p1953)

</llo_original>
